<compile_context>
chip_gen: v5e
topology: v5e:2x2
jax: 0.10.0
libtpu: 0.0.40
codegen_flags: <defaults>
</compile_context>

<pallas_src>
import jax
import jax.numpy as jnp
from jax.experimental import pallas as pl
from jax.experimental.pallas import tpu as pltpu


# ---------------------------------------------------------------------------
# Kernel 1: layer-1 GraphConv (+relu) fused with the layer-2 projection.
#   out tile p[i] = norm_out[i] * ( relu( norm_in[i] * (A[i,:] @ (norm_out * X)) @ W1 + b1 ) @ W2 )
# Grid: (dst-row tiles, src/contraction tiles); contraction is the last ("arbitrary") axis.
# ---------------------------------------------------------------------------
def _layer1_and_project_kernel(a_ref, x_ref, no_k_ref, ni_i_ref, no_i_ref,
                               w1_ref, b1_ref, w2_ref, p_ref, acc_ref):
    k = pl.program_id(1)

    @pl.when(k == 0)
    def _():
        acc_ref[...] = jnp.zeros_like(acc_ref)

    # Fold the src-degree norm into the feature rows (O(N*F) VPU work instead of an
    # O(N^2) a_norm materialization), then feed bf16 operands to the MXU.
    xs = (no_k_ref[...] * x_ref[...]).astype(jnp.bfloat16)          # [tk, F_in]
    acc_ref[...] += jnp.dot(a_ref[...], xs,                          # A tile is bf16
                            preferred_element_type=jnp.float32)      # [tm, F_in] f32

    @pl.when(k == pl.num_programs(1) - 1)
    def _():
        agg = ni_i_ref[...] * acc_ref[...]                           # dst norm, layer 1
        h = jnp.dot(agg.astype(jnp.bfloat16), w1_ref[...],
                    preferred_element_type=jnp.float32) + b1_ref[...]
        h = jnp.maximum(h, 0.0)                                      # [tm, H]
        # Layer-2 projection (project-before-aggregate) + its src-degree norm.
        p = jnp.dot(h.astype(jnp.bfloat16), w2_ref[...],
                    preferred_element_type=jnp.float32)              # [tm, C_pad]
        p_ref[...] = (no_i_ref[...] * p).astype(jnp.bfloat16)


# ---------------------------------------------------------------------------
# Kernel 2: layer-2 aggregation.
#   out[i] = norm_in[i] * (A[i,:] @ P) + b2
# ---------------------------------------------------------------------------
def _layer2_aggregate_kernel(a_ref, p_ref, ni_i_ref, b2_ref, o_ref, acc_ref):
    k = pl.program_id(1)

    @pl.when(k == 0)
    def _():
        acc_ref[...] = jnp.zeros_like(acc_ref)

    acc_ref[...] += jnp.dot(a_ref[...], p_ref[...],
                            preferred_element_type=jnp.float32)      # [tm, C_pad]

    @pl.when(k == pl.num_programs(1) - 1)
    def _():
        o_ref[...] = ni_i_ref[...] * acc_ref[...] + b2_ref[...]


def gcn_forward(a, x, w1, b1, w2, b2, *, tile_m=128, tile_k=128):
    n, f_in = x.shape
    h_feats = w1.shape[1]
    num_classes = w2.shape[1]
    c_pad = ((num_classes + 127) // 128) * 128      # lane-dense class dim (pad with zeros)

    tm = min(tile_m, n)
    tk = min(tile_k, n)
    assert n % tm == 0 and n % tk == 0, "N must be a multiple of the tile sizes"
    grid = (n // tm, n // tk)

    # Degree norms in f32 from the f32 adjacency (before the bf16 cast), clamp(min=1)
    # as in DGL's GraphConv.
    a_f32 = a.astype(jnp.float32)
    norm_in = jax.lax.rsqrt(jnp.maximum(a_f32.sum(axis=1, keepdims=True), 1.0))      # [N,1] dst
    norm_out = jax.lax.rsqrt(jnp.maximum(a_f32.sum(axis=0, keepdims=True), 1.0)).T   # [N,1] src

    a_bf16 = a_f32.astype(jnp.bfloat16)
    w1_bf16 = w1.astype(jnp.bfloat16)
    w2_pad = jnp.zeros((h_feats, c_pad), jnp.bfloat16).at[:, :num_classes].set(
        w2.astype(jnp.bfloat16))
    b1_r = b1.reshape(1, -1).astype(jnp.float32)
    b2_pad = jnp.zeros((1, c_pad), jnp.float32).at[:, :num_classes].set(
        b2.reshape(1, -1).astype(jnp.float32))

    compiler_params = pltpu.CompilerParams(
        dimension_semantics=("parallel", "arbitrary"),
        vmem_limit_bytes=32 * 1024 * 1024,
    )

    # --- kernel 1: layer-1 conv (+relu) fused with layer-2 projection -> P [N, C_pad] bf16
    p = pl.pallas_call(
        _layer1_and_project_kernel,
        out_shape=jax.ShapeDtypeStruct((n, c_pad), jnp.bfloat16),
        grid_spec=pltpu.PrefetchScalarGridSpec(
            num_scalar_prefetch=0,
            grid=grid,
            in_specs=[
                pl.BlockSpec((tm, tk), lambda i, k: (i, k)),           # A[dst, src]
                pl.BlockSpec((tk, f_in), lambda i, k: (k, 0)),         # X (src rows)
                pl.BlockSpec((tk, 1), lambda i, k: (k, 0)),            # norm_out[src]
                pl.BlockSpec((tm, 1), lambda i, k: (i, 0)),            # norm_in[dst]
                pl.BlockSpec((tm, 1), lambda i, k: (i, 0)),            # norm_out at dst rows (layer-2 src norm)
                pl.BlockSpec((f_in, h_feats), lambda i, k: (0, 0)),    # W1
                pl.BlockSpec((1, h_feats), lambda i, k: (0, 0)),       # b1
                pl.BlockSpec((h_feats, c_pad), lambda i, k: (0, 0)),   # W2 (padded)
            ],
            out_specs=pl.BlockSpec((tm, c_pad), lambda i, k: (i, 0)),
            scratch_shapes=[pltpu.VMEM((tm, f_in), jnp.float32)],
        ),
        compiler_params=compiler_params,
        cost_estimate=pl.CostEstimate(
            flops=2 * n * n * f_in + 2 * n * (f_in * h_feats + h_feats * c_pad),
            transcendentals=0,
            bytes_accessed=2 * n * n + 4 * n * f_in + 2 * n * c_pad,
        ),
    )(a_bf16, x.astype(jnp.float32), norm_out, norm_in, norm_out, w1_bf16, b1_r, w2_pad)

    # --- kernel 2: layer-2 aggregation -> logits [N, C_pad] f32
    out_pad = pl.pallas_call(
        _layer2_aggregate_kernel,
        out_shape=jax.ShapeDtypeStruct((n, c_pad), jnp.float32),
        grid_spec=pltpu.PrefetchScalarGridSpec(
            num_scalar_prefetch=0,
            grid=grid,
            in_specs=[
                pl.BlockSpec((tm, tk), lambda i, k: (i, k)),           # A[dst, src]
                pl.BlockSpec((tk, c_pad), lambda i, k: (k, 0)),        # P (src rows)
                pl.BlockSpec((tm, 1), lambda i, k: (i, 0)),            # norm_in[dst]
                pl.BlockSpec((1, c_pad), lambda i, k: (0, 0)),         # b2 (padded)
            ],
            out_specs=pl.BlockSpec((tm, c_pad), lambda i, k: (i, 0)),
            scratch_shapes=[pltpu.VMEM((tm, c_pad), jnp.float32)],
        ),
        compiler_params=compiler_params,
        cost_estimate=pl.CostEstimate(
            flops=2 * n * n * c_pad,
            transcendentals=0,
            bytes_accessed=2 * n * n + 2 * n * c_pad + 4 * n * c_pad,
        ),
    )(a_bf16, p, norm_in, b2_pad)

    return out_pad[:, :num_classes]


# ---------------------------------------------------------------------------
# References
# ---------------------------------------------------------------------------
def _reference_f32(a, x, w1, b1, w2, b2):
    deg_in = jnp.maximum(a.sum(axis=1, keepdims=True), 1.0)
    deg_out = jnp.maximum(a.sum(axis=0, keepdims=True), 1.0)
    a_norm = (deg_in ** -0.5) * a * (deg_out ** -0.5)
    h = jnp.maximum(a_norm @ x @ w1 + b1.reshape(1, -1), 0.0)
    return a_norm @ h @ w2 + b2.reshape(1, -1)


def _reference_bf16_matched(a, x, w1, b1, w2, b2):
    """Same algebra as the kernels (bf16 operands, f32 accumulation)."""
    bf = jnp.bfloat16
    norm_in = jax.lax.rsqrt(jnp.maximum(a.sum(axis=1, keepdims=True), 1.0))
    norm_out = jax.lax.rsqrt(jnp.maximum(a.sum(axis=0, keepdims=True), 1.0)).T
    a_bf = a.astype(bf)
    agg = norm_in * jnp.dot(a_bf, (norm_out * x).astype(bf),
                            preferred_element_type=jnp.float32)
    h = jnp.maximum(jnp.dot(agg.astype(bf), w1.astype(bf),
                            preferred_element_type=jnp.float32) + b1.reshape(1, -1), 0.0)
    p = (norm_out * jnp.dot(h.astype(bf), w2.astype(bf),
                            preferred_element_type=jnp.float32)).astype(bf)
    return norm_in * jnp.dot(a_bf, p, preferred_element_type=jnp.float32) + b2.reshape(1, -1)


if __name__ == "__main__":
    N, in_feats, h_feats, num_classes = 256, 16, 32, 8

    key = jax.random.PRNGKey(0)
    k_adj, k_x, k_w1, k_w2 = jax.random.split(key, 4)

    # synthetic undirected graph as a dense adjacency matrix with self-loops
    adj_rand = jax.random.uniform(k_adj, (N, N), dtype=jnp.float32)
    adj = (adj_rand < 0.05).astype(jnp.float32)
    adj = jnp.maximum(adj, adj.T)                               # symmetrize
    adj = jnp.maximum(adj, jnp.eye(N, dtype=jnp.float32))       # self-loops

    x = jax.random.normal(k_x, (N, in_feats), dtype=jnp.float32)

    # Glorot-style init (GraphConv default: xavier weight, zero bias)
    lim1 = (6.0 / (in_feats + h_feats)) ** 0.5
    w1 = jax.random.uniform(k_w1, (in_feats, h_feats), jnp.float32, -lim1, lim1)
    b1 = jnp.zeros((1, h_feats), jnp.float32)
    lim2 = (6.0 / (h_feats + num_classes)) ** 0.5
    w2 = jax.random.uniform(k_w2, (h_feats, num_classes), jnp.float32, -lim2, lim2)
    b2 = jnp.zeros((1, num_classes), jnp.float32)

    out = gcn_forward(adj, x, w1, b1, w2, b2, tile_m=128, tile_k=128)
    out = jax.block_until_ready(out)

    ref_bf = _reference_bf16_matched(adj, x, w1, b1, w2, b2)
    ref_32 = _reference_f32(adj, x, w1, b1, w2, b2)

    assert out.shape == (N, num_classes)
    assert jnp.allclose(out, ref_bf, atol=2e-3, rtol=2e-2), "mismatch vs bf16-matched reference"
    assert jnp.allclose(out, ref_32, atol=5e-2, rtol=5e-2), "mismatch vs f32 reference"

    print("KERNEL_OK")
</pallas_src>

<mosaic_0001>
module attributes {stable_mosaic.version = 11 : i64} {
  func.func @_layer1_and_project_kernel(%arg0: i32, %arg1: i32, %arg2: memref<128x128xbf16, #tpu.memory_space<vmem>>, %arg3: memref<128x16xf32, #tpu.memory_space<vmem>>, %arg4: memref<128x1xf32, #tpu.memory_space<vmem>>, %arg5: memref<128x1xf32, #tpu.memory_space<vmem>>, %arg6: memref<128x1xf32, #tpu.memory_space<vmem>>, %arg7: memref<16x32xbf16, #tpu.memory_space<vmem>>, %arg8: memref<1x32xf32, #tpu.memory_space<vmem>>, %arg9: memref<32x128xbf16, #tpu.memory_space<vmem>>, %arg10: memref<128x128xbf16, #tpu.memory_space<vmem>>, %arg11: memref<128x16xf32, #tpu.memory_space<vmem>>) attributes {dimension_semantics = [#tpu.dimension_semantics<parallel>, #tpu.dimension_semantics<arbitrary>], iteration_bounds = array<i64: 2, 2>, scalar_prefetch = 0 : i64, scratch_operands = 1 : i64, tpu.core_type = #tpu.core_type<tc>, window_params = [{transform_indices = @transform_0, window_bounds = array<i64: 128, 128>}, {transform_indices = @transform_1, window_bounds = array<i64: 128, 16>}, {transform_indices = @transform_2, window_bounds = array<i64: 128, 1>}, {transform_indices = @transform_3, window_bounds = array<i64: 128, 1>}, {transform_indices = @transform_4, window_bounds = array<i64: 128, 1>}, {pipeline_mode = #tpu.pipeline_mode<synchronous>, transform_indices = @transform_5, window_bounds = array<i64: 16, 32>}, {pipeline_mode = #tpu.pipeline_mode<synchronous>, transform_indices = @transform_6, window_bounds = array<i64: 1, 32>}, {pipeline_mode = #tpu.pipeline_mode<synchronous>, transform_indices = @transform_7, window_bounds = array<i64: 32, 128>}, {transform_indices = @transform_8, window_bounds = array<i64: 128, 128>}]} {
    %c0_i32 = arith.constant 0 : i32
    %0 = arith.cmpi eq, %arg1, %c0_i32 : i32
    %1 = arith.extui %0 : i1 to i32
    %c0_i32_0 = arith.constant 0 : i32
    %2 = arith.cmpi ne, %1, %c0_i32_0 : i32
    scf.if %2 {
      %cst_11 = arith.constant 0.000000e+00 : f32
      %16 = vector.broadcast %cst_11 : f32 to vector<128x16xf32>
      %c0_12 = arith.constant 0 : index
      %c0_13 = arith.constant 0 : index
      %17 = vector.load %arg11[%c0_12, %c0_13] : memref<128x16xf32, #tpu.memory_space<vmem>>, vector<128x16xf32>
      tpu.vector_store %arg11[%c0_12, %c0_13], %16 {strides = array<i32>} : memref<128x16xf32, #tpu.memory_space<vmem>>, vector<128x16xf32>,
    } else {
    }
    %c0 = arith.constant 0 : index
    %c0_1 = arith.constant 0 : index
    %3 = vector.load %arg4[%c0, %c0_1] : memref<128x1xf32, #tpu.memory_space<vmem>>, vector<128x1xf32>
    %c0_2 = arith.constant 0 : index
    %c0_3 = arith.constant 0 : index
    %4 = vector.load %arg3[%c0_2, %c0_3] : memref<128x16xf32, #tpu.memory_space<vmem>>, vector<128x16xf32>
    %5 = vector.broadcast %3 : vector<128x1xf32> to vector<128x16xf32>
    %6 = arith.mulf %5, %4 : vector<128x16xf32>
    %7 = arith.truncf %6 : vector<128x16xf32> to vector<128x16xbf16>
    %c0_4 = arith.constant 0 : index
    %c0_5 = arith.constant 0 : index
    %8 = vector.load %arg11[%c0_4, %c0_5] : memref<128x16xf32, #tpu.memory_space<vmem>>, vector<128x16xf32>
    %c0_6 = arith.constant 0 : index
    %c0_7 = arith.constant 0 : index
    %9 = vector.load %arg2[%c0_6, %c0_7] : memref<128x128xbf16, #tpu.memory_space<vmem>>, vector<128x128xbf16>
    %cst = arith.constant dense<0.000000e+00> : vector<128x16xf32>
    %10 = tpu.matmul %9, %7, %cst {dimension_numbers = #tpu.dot_dimension_numbers<[1], [0], [0], [1], [0, 0, 1, 1], [], []>} : vector<128x128xbf16>, vector<128x16xbf16>, vector<128x16xf32> -> vector<128x16xf32>
    %11 = arith.addf %8, %10 : vector<128x16xf32>
    %c0_8 = arith.constant 0 : index
    %c0_9 = arith.constant 0 : index
    %12 = vector.load %arg11[%c0_8, %c0_9] : memref<128x16xf32, #tpu.memory_space<vmem>>, vector<128x16xf32>
    tpu.vector_store %arg11[%c0_8, %c0_9], %11 {strides = array<i32>} : memref<128x16xf32, #tpu.memory_space<vmem>>, vector<128x16xf32>,
    %c1_i32 = arith.constant 1 : i32
    %13 = arith.cmpi eq, %arg1, %c1_i32 : i32
    %14 = arith.extui %13 : i1 to i32
    %c0_i32_10 = arith.constant 0 : i32
    %15 = arith.cmpi ne, %14, %c0_i32_10 : i32
    scf.if %15 {
      %c0_11 = arith.constant 0 : index
      %c0_12 = arith.constant 0 : index
      %16 = vector.load %arg5[%c0_11, %c0_12] : memref<128x1xf32, #tpu.memory_space<vmem>>, vector<128x1xf32>
      %c0_13 = arith.constant 0 : index
      %c0_14 = arith.constant 0 : index
      %17 = vector.load %arg11[%c0_13, %c0_14] : memref<128x16xf32, #tpu.memory_space<vmem>>, vector<128x16xf32>
      %18 = vector.broadcast %16 : vector<128x1xf32> to vector<128x16xf32>
      %19 = arith.mulf %18, %17 : vector<128x16xf32>
      %20 = arith.truncf %19 : vector<128x16xf32> to vector<128x16xbf16>
      %c0_15 = arith.constant 0 : index
      %c0_16 = arith.constant 0 : index
      %21 = vector.load %arg7[%c0_15, %c0_16] : memref<16x32xbf16, #tpu.memory_space<vmem>>, vector<16x32xbf16>
      %cst_17 = arith.constant dense<0.000000e+00> : vector<128x32xf32>
      %22 = tpu.matmul %20, %21, %cst_17 {dimension_numbers = #tpu.dot_dimension_numbers<[1], [0], [0], [1], [0, 0, 1, 1], [], []>} : vector<128x16xbf16>, vector<16x32xbf16>, vector<128x32xf32> -> vector<128x32xf32>
      %c0_18 = arith.constant 0 : index
      %c0_19 = arith.constant 0 : index
      %23 = vector.load %arg8[%c0_18, %c0_19] : memref<1x32xf32, #tpu.memory_space<vmem>>, vector<1x32xf32>
      %24 = vector.broadcast %23 : vector<1x32xf32> to vector<128x32xf32>
      %25 = arith.addf %22, %24 : vector<128x32xf32>
      %cst_20 = arith.constant 0.000000e+00 : f32
      %26 = vector.broadcast %cst_20 : f32 to vector<128x32xf32>
      %27 = arith.maximumf %25, %26 : vector<128x32xf32>
      %28 = arith.truncf %27 : vector<128x32xf32> to vector<128x32xbf16>
      %c0_21 = arith.constant 0 : index
      %c0_22 = arith.constant 0 : index
      %29 = vector.load %arg9[%c0_21, %c0_22] : memref<32x128xbf16, #tpu.memory_space<vmem>>, vector<32x128xbf16>
      %cst_23 = arith.constant dense<0.000000e+00> : vector<128x128xf32>
      %30 = tpu.matmul %28, %29, %cst_23 {dimension_numbers = #tpu.dot_dimension_numbers<[1], [0], [0], [1], [0, 0, 1, 1], [], []>} : vector<128x32xbf16>, vector<32x128xbf16>, vector<128x128xf32> -> vector<128x128xf32>
      %c0_24 = arith.constant 0 : index
      %c0_25 = arith.constant 0 : index
      %31 = vector.load %arg6[%c0_24, %c0_25] : memref<128x1xf32, #tpu.memory_space<vmem>>, vector<128x1xf32>
      %32 = vector.broadcast %31 : vector<128x1xf32> to vector<128x128xf32>
      %33 = arith.mulf %32, %30 : vector<128x128xf32>
      %34 = arith.truncf %33 : vector<128x128xf32> to vector<128x128xbf16>
      %c0_26 = arith.constant 0 : index
      %c0_27 = arith.constant 0 : index
      %35 = vector.load %arg10[%c0_26, %c0_27] : memref<128x128xbf16, #tpu.memory_space<vmem>>, vector<128x128xbf16>
      tpu.vector_store %arg10[%c0_26, %c0_27], %34 {strides = array<i32>} : memref<128x128xbf16, #tpu.memory_space<vmem>>, vector<128x128xbf16>,
    } else {
    }
    return
  }
  func.func @transform_0(%arg0: i32, %arg1: i32) -> (i32, i32) {
    %c0_i32 = arith.constant 0 : i32
    return %arg0, %arg1 : i32, i32
  }
  func.func @transform_1(%arg0: i32, %arg1: i32) -> (i32, i32) {
    %c0_i32 = arith.constant 0 : i32
    %c0_i32_0 = arith.constant 0 : i32
    return %arg1, %c0_i32 : i32, i32
  }
  func.func @transform_2(%arg0: i32, %arg1: i32) -> (i32, i32) {
    %c0_i32 = arith.constant 0 : i32
    %c0_i32_0 = arith.constant 0 : i32
    return %arg1, %c0_i32 : i32, i32
  }
  func.func @transform_3(%arg0: i32, %arg1: i32) -> (i32, i32) {
    %c0_i32 = arith.constant 0 : i32
    %c0_i32_0 = arith.constant 0 : i32
    return %arg0, %c0_i32 : i32, i32
  }
  func.func @transform_4(%arg0: i32, %arg1: i32) -> (i32, i32) {
    %c0_i32 = arith.constant 0 : i32
    %c0_i32_0 = arith.constant 0 : i32
    return %arg0, %c0_i32 : i32, i32
  }
  func.func @transform_5(%arg0: i32, %arg1: i32) -> (i32, i32) {
    %c0_i32 = arith.constant 0 : i32
    %c0_i32_0 = arith.constant 0 : i32
    %c0_i32_1 = arith.constant 0 : i32
    return %c0_i32, %c0_i32_0 : i32, i32
  }
  func.func @transform_6(%arg0: i32, %arg1: i32) -> (i32, i32) {
    %c0_i32 = arith.constant 0 : i32
    %c0_i32_0 = arith.constant 0 : i32
    %c0_i32_1 = arith.constant 0 : i32
    return %c0_i32, %c0_i32_0 : i32, i32
  }
  func.func @transform_7(%arg0: i32, %arg1: i32) -> (i32, i32) {
    %c0_i32 = arith.constant 0 : i32
    %c0_i32_0 = arith.constant 0 : i32
    %c0_i32_1 = arith.constant 0 : i32
    return %c0_i32, %c0_i32_0 : i32, i32
  }
  func.func @transform_8(%arg0: i32, %arg1: i32) -> (i32, i32) {
    %c0_i32 = arith.constant 0 : i32
    %c0_i32_0 = arith.constant 0 : i32
    return %arg0, %c0_i32 : i32, i32
  }
}

</mosaic_0001>

<llo_original>
// kernel: tpu_custom_call.1
$region0: #{tpu_custom_call.1}
  #allocation0 [shape = 'u32[]', space=smem, size = 0x4, offset = 0x4, fixed_abs, tag = 'smem constant byte address 0x4 - core index']
  #allocation1 [shape = 'u32[72,128]{1,0:T(1,128)}', space=vmem, size = 0x9000, scoped, tag = 'internal scratch']
  #allocation2 [shape = 'f32[128,16]{1,0:T(8,128)}', space=vmem, size = 0x10000, scoped, tag = 'scratch operand']
  %s0 = inlined_call_operand.vmem [shape: bf16[256,256], index: 0, kind: input, shape index: {}]
  %s1 = inlined_call_operand.vmem [shape: f32[256,16], index: 1, kind: input, shape index: {}]
  %s2 = inlined_call_operand.vmem [shape: f32[256,1], index: 2, kind: input, shape index: {}]
  %s3 = inlined_call_operand.vmem [shape: f32[256,1], index: 3, kind: input, shape index: {}]
  %s4 = inlined_call_operand.vmem [shape: f32[256,1], index: 4, kind: input, shape index: {}]
  %s5 = inlined_call_operand.vmem [shape: bf16[16,32], index: 5, kind: input, shape index: {}]
  %s6 = inlined_call_operand.vmem [shape: f32[1,32], index: 6, kind: input, shape index: {}]
  %s7 = inlined_call_operand.vmem [shape: bf16[32,128], index: 7, kind: input, shape index: {}]
  %s8 = inlined_call_operand.hbm [shape: bf16[256,128], index: 8, kind: output, shape index: {}]
  %s9 = sld [smem:[#allocation0]]
  $region114: #{tpu_custom_call.1} parent=0
    _
  %s11 = ssub.s32 1, %s9
  %s12 = scalar_select 0, %s11, %s9
  $region1: #{tpu_custom_call.1} parent=0
    #allocation3 [shape = 'u8[65536]{0}', space=vmem, size = 0x10000, scoped, tag = 'input window, operand 0']
    #allocation4 [shape = 'u8[65536]{0}', space=vmem, size = 0x10000, scoped, tag = 'output window, operand 0']
    #allocation5 [shape = 's32[2]{0}', space=sflag, size = 0x8, scoped, tag = 'scoped memory for tpu_custom_call.1']
    %13 = vsyncpa [#allocation5], 0
    %s14 = scalar_lea.sflag [#allocation5], 1
    %15 = vsyncpa %s14, 0
    loop: start=0, step=1, limit=6
    $region2: #{tpu_custom_call.1} parent=1 // loop_pre_header
      _
    $region3: #{tpu_custom_call.1} parent=1 // loop_header
      %s17 = sphi 0, %s21
      %p18 = scmp.ge.s32.totalorder %s17, 6
      %s24 = sphi 0, %s36
      %s25 = sphi 0, %s32
      %s26 = sphi 0, %s24
      %s27 = sphi 0, %s25
      %s28 = sphi 0, %s26
      %s29 = sphi 0, %s27
      %s41 = sphi 0, %s43
      %s44 = sphi 0, %s41
      %s45 = sphi 0, %s44
      %s61 = sphi 0, %s45
      %s67 = sphi 0, %s69
      %s70 = sphi 0, %s67
      %s71 = sphi 0, %s70
      %s87 = sphi 0, %s71
      %s93 = sphi 0, %s95
      %s96 = sphi 0, %s93
      %s97 = sphi 0, %s96
      %s113 = sphi 0, %s97
      %s119 = sphi 0, %s121
      %s122 = sphi 0, %s119
      %s123 = sphi 0, %s122
      %s139 = sphi 0, %s123
      %s145 = sphi 0, %s147
      %s148 = sphi 0, %s145
      %s149 = sphi 0, %s148
      %s165 = sphi 0, %s149
      %s169 = sphi 0, %s169
      %s171 = sphi 0, %s169
      %s172 = sphi 0, %s171
      %s186 = sphi 0, %s172
      %s190 = sphi 0, %s190
      %s192 = sphi 0, %s190
      %s193 = sphi 0, %s192
      %s207 = sphi 0, %s193
      %s211 = sphi 0, %s211
      %s213 = sphi 0, %s211
      %s214 = sphi 0, %s213
      %s228 = sphi 0, %s214
      %s234 = sphi 0, %s236
      %s237 = sphi 0, %s234
      %s238 = sphi 0, %s237
      %s254 = sphi 0, %s238
    $region4: #{tpu_custom_call.1} parent=1 // loop_header_branch
      %20 = sbr.rel (%p18) target = $region8
    $region5: #{tpu_custom_call.1} parent=1 // loop_body
      %s22 = ssub.s32 %s17, 1
      %s23 = ssub.s32 %s17, 2
      %s30 = sadd.s32 1, %s25
      %p31 = scmp.ge.s32.totalorder %s30, 2
      %s32 = scalar_select %p31, 0, %s30
      %s33 = sadd.s32 1, %s24
      %s34 = scalar_select %p31, %s33, %s24
      %p35 = scmp.ge.s32.totalorder %s34, 2
      %s36 = scalar_select %p35, 0, %s34
      %s37 = ssub.s32 %s24, %s36
      %s38 = ssub.s32 %s25, %s32
      %s39 = sor.u32 %s37, %s38
      %p40 = scmp.eq.s32.totalorder %s39, 0
      %s42 = sadd.s32 %s41, 1
      %s43 = scalar_select %p40, %s41, %s42
      %p46 = pneg %p40
      %p47 = scmp.eq.s32.totalorder %s17, 3
      %p48 = por %p46, %p47
      %p49 = scmp.ne.s32.totalorder %s41, %s44
      %p50 = scmp.eq.s32.totalorder %s17, 0
      %p51 = por %p49, %p50
      %p52 = scmp.ne.s32.totalorder %s41, %s44
      %p53 = scmp.eq.s32.totalorder %s22, 3
      %p54 = por %p52, %p53
      %p55 = scmp.ne.s32.totalorder %s44, %s45
      %p56 = scmp.eq.s32.totalorder %s22, 0
      %p57 = por %p55, %p56
      %p58 = scmp.ne.s32.totalorder %s44, %s45
      %p59 = scmp.eq.s32.totalorder %s23, 3
      %p60 = por %p58, %p59
      %p62 = scmp.ne.s32.totalorder %s45, %s61
      %p63 = scmp.eq.s32.totalorder %s23, 0
      %p64 = por %p62, %p63
      %s65 = ssub.s32 %s25, %s32
      %p66 = scmp.eq.s32.totalorder %s65, 0
      %s68 = sadd.s32 %s67, 1
      %s69 = scalar_select %p66, %s67, %s68
      %p72 = pneg %p66
      %p73 = scmp.eq.s32.totalorder %s17, 3
      %p74 = por %p72, %p73
      %p75 = scmp.ne.s32.totalorder %s67, %s70
      %p76 = scmp.eq.s32.totalorder %s17, 0
      %p77 = por %p75, %p76
      %p78 = scmp.ne.s32.totalorder %s67, %s70
      %p79 = scmp.eq.s32.totalorder %s22, 3
      %p80 = por %p78, %p79
      %p81 = scmp.ne.s32.totalorder %s70, %s71
      %p82 = scmp.eq.s32.totalorder %s22, 0
      %p83 = por %p81, %p82
      %p84 = scmp.ne.s32.totalorder %s70, %s71
      %p85 = scmp.eq.s32.totalorder %s23, 3
      %p86 = por %p84, %p85
      %p88 = scmp.ne.s32.totalorder %s71, %s87
      %p89 = scmp.eq.s32.totalorder %s23, 0
      %p90 = por %p88, %p89
      %s91 = ssub.s32 %s25, %s32
      %p92 = scmp.eq.s32.totalorder %s91, 0
      %s94 = sadd.s32 %s93, 1
      %s95 = scalar_select %p92, %s93, %s94
      %p98 = pneg %p92
      %p99 = scmp.eq.s32.totalorder %s17, 3
      %p100 = por %p98, %p99
      %p101 = scmp.ne.s32.totalorder %s93, %s96
      %p102 = scmp.eq.s32.totalorder %s17, 0
      %p103 = por %p101, %p102
      %p104 = scmp.ne.s32.totalorder %s93, %s96
      %p105 = scmp.eq.s32.totalorder %s22, 3
      %p106 = por %p104, %p105
      %p107 = scmp.ne.s32.totalorder %s96, %s97
      %p108 = scmp.eq.s32.totalorder %s22, 0
      %p109 = por %p107, %p108
      %p110 = scmp.ne.s32.totalorder %s96, %s97
      %p111 = scmp.eq.s32.totalorder %s23, 3
      %p112 = por %p110, %p111
      %p114 = scmp.ne.s32.totalorder %s97, %s113
      %p115 = scmp.eq.s32.totalorder %s23, 0
      %p116 = por %p114, %p115
      %s117 = ssub.s32 %s24, %s36
      %p118 = scmp.eq.s32.totalorder %s117, 0
      %s120 = sadd.s32 %s119, 1
      %s121 = scalar_select %p118, %s119, %s120
      %p124 = pneg %p118
      %p125 = scmp.eq.s32.totalorder %s17, 3
      %p126 = por %p124, %p125
      %p127 = scmp.ne.s32.totalorder %s119, %s122
      %p128 = scmp.eq.s32.totalorder %s17, 0
      %p129 = por %p127, %p128
      %p130 = scmp.ne.s32.totalorder %s119, %s122
      %p131 = scmp.eq.s32.totalorder %s22, 3
      %p132 = por %p130, %p131
      %p133 = scmp.ne.s32.totalorder %s122, %s123
      %p134 = scmp.eq.s32.totalorder %s22, 0
      %p135 = por %p133, %p134
      %p136 = scmp.ne.s32.totalorder %s122, %s123
      %p137 = scmp.eq.s32.totalorder %s23, 3
      %p138 = por %p136, %p137
      %p140 = scmp.ne.s32.totalorder %s123, %s139
      %p141 = scmp.eq.s32.totalorder %s23, 0
      %p142 = por %p140, %p141
      %s143 = ssub.s32 %s24, %s36
      %p144 = scmp.eq.s32.totalorder %s143, 0
      %s146 = sadd.s32 %s145, 1
      %s147 = scalar_select %p144, %s145, %s146
      %p150 = pneg %p144
      %p151 = scmp.eq.s32.totalorder %s17, 3
      %p152 = por %p150, %p151
      %p153 = scmp.ne.s32.totalorder %s145, %s148
      %p154 = scmp.eq.s32.totalorder %s17, 0
      %p155 = por %p153, %p154
      %p156 = scmp.ne.s32.totalorder %s145, %s148
      %p157 = scmp.eq.s32.totalorder %s22, 3
      %p158 = por %p156, %p157
      %p159 = scmp.ne.s32.totalorder %s148, %s149
      %p160 = scmp.eq.s32.totalorder %s22, 0
      %p161 = por %p159, %p160
      %p162 = scmp.ne.s32.totalorder %s148, %s149
      %p163 = scmp.eq.s32.totalorder %s23, 3
      %p164 = por %p162, %p163
      %p166 = scmp.ne.s32.totalorder %s149, %s165
      %p167 = scmp.eq.s32.totalorder %s23, 0
      %p168 = por %p166, %p167
      %s170 = sadd.s32 %s169, 1
      %p173 = scmp.eq.s32.totalorder %s17, 3
      %p174 = scmp.ne.s32.totalorder %s169, %s171
      %p175 = scmp.eq.s32.totalorder %s17, 0
      %p176 = por %p174, %p175
      %p177 = scmp.ne.s32.totalorder %s169, %s171
      %p178 = scmp.eq.s32.totalorder %s22, 3
      %p179 = por %p177, %p178
      %p180 = scmp.ne.s32.totalorder %s171, %s172
      %p181 = scmp.eq.s32.totalorder %s22, 0
      %p182 = por %p180, %p181
      %p183 = scmp.ne.s32.totalorder %s171, %s172
      %p184 = scmp.eq.s32.totalorder %s23, 3
      %p185 = por %p183, %p184
      %p187 = scmp.ne.s32.totalorder %s172, %s186
      %p188 = scmp.eq.s32.totalorder %s23, 0
      %p189 = por %p187, %p188
      %s191 = sadd.s32 %s190, 1
      %p194 = scmp.eq.s32.totalorder %s17, 3
      %p195 = scmp.ne.s32.totalorder %s190, %s192
      %p196 = scmp.eq.s32.totalorder %s17, 0
      %p197 = por %p195, %p196
      %p198 = scmp.ne.s32.totalorder %s190, %s192
      %p199 = scmp.eq.s32.totalorder %s22, 3
      %p200 = por %p198, %p199
      %p201 = scmp.ne.s32.totalorder %s192, %s193
      %p202 = scmp.eq.s32.totalorder %s22, 0
      %p203 = por %p201, %p202
      %p204 = scmp.ne.s32.totalorder %s192, %s193
      %p205 = scmp.eq.s32.totalorder %s23, 3
      %p206 = por %p204, %p205
      %p208 = scmp.ne.s32.totalorder %s193, %s207
      %p209 = scmp.eq.s32.totalorder %s23, 0
      %p210 = por %p208, %p209
      %s212 = sadd.s32 %s211, 1
      %p215 = scmp.eq.s32.totalorder %s17, 3
      %p216 = scmp.ne.s32.totalorder %s211, %s213
      %p217 = scmp.eq.s32.totalorder %s17, 0
      %p218 = por %p216, %p217
      %p219 = scmp.ne.s32.totalorder %s211, %s213
      %p220 = scmp.eq.s32.totalorder %s22, 3
      %p221 = por %p219, %p220
      %p222 = scmp.ne.s32.totalorder %s213, %s214
      %p223 = scmp.eq.s32.totalorder %s22, 0
      %p224 = por %p222, %p223
      %p225 = scmp.ne.s32.totalorder %s213, %s214
      %p226 = scmp.eq.s32.totalorder %s23, 3
      %p227 = por %p225, %p226
      %p229 = scmp.ne.s32.totalorder %s214, %s228
      %p230 = scmp.eq.s32.totalorder %s23, 0
      %p231 = por %p229, %p230
      %s232 = ssub.s32 %s24, %s36
      %p233 = scmp.eq.s32.totalorder %s232, 0
      %s235 = sadd.s32 %s234, 1
      %s236 = scalar_select %p233, %s234, %s235
      %p239 = pneg %p233
      %p240 = scmp.eq.s32.totalorder %s17, 3
      %p241 = por %p239, %p240
      %p242 = scmp.ne.s32.totalorder %s234, %s237
      %p243 = scmp.eq.s32.totalorder %s17, 0
      %p244 = por %p242, %p243
      %p245 = scmp.ne.s32.totalorder %s234, %s237
      %p246 = scmp.eq.s32.totalorder %s22, 3
      %p247 = por %p245, %p246
      %p248 = scmp.ne.s32.totalorder %s237, %s238
      %p249 = scmp.eq.s32.totalorder %s22, 0
      %p250 = por %p248, %p249
      %p251 = scmp.ne.s32.totalorder %s237, %s238
      %p252 = scmp.eq.s32.totalorder %s23, 3
      %p253 = por %p251, %p252
      %p255 = scmp.ne.s32.totalorder %s238, %s254
      %p256 = scmp.eq.s32.totalorder %s23, 0
      %p257 = por %p255, %p256
      %p258 = scmp.le.s32.totalorder 1, %s17
      %p259 = scmp.lt.s32.totalorder %s17, 5
      %p260 = pnand %p258, %p259
      %p261 = pneg %p260
      // Predicated region
      $region9: #{tpu_custom_call.1} parent=5 // pred_check
        _
      $region10: #{tpu_custom_call.1} parent=5 // pred_check_branch
        %263 = sbr.rel (%p260) target = $region12
      $region11: #{tpu_custom_call.1} parent=5 // pred_region
        %s264 = ssub.s32 %s17, 1
        // Predicated region
        $region13: #{tpu_custom_call.1} parent=11 // pred_check
          %p265 = pneg %p182
        $region14: #{tpu_custom_call.1} parent=11 // pred_check_branch
          %267 = sbr.rel (%p265) target = $region16
        $region15: #{tpu_custom_call.1} parent=11 // pred_region
          _
        $region16: #{tpu_custom_call.1} parent=11 // pred_fallthru
          _
        // Predicated region
        $region17: #{tpu_custom_call.1} parent=11 // pred_check
          %p268 = pneg %p203
        $region18: #{tpu_custom_call.1} parent=11 // pred_check_branch
          %270 = sbr.rel (%p268) target = $region20
        $region19: #{tpu_custom_call.1} parent=11 // pred_region
          _
        $region20: #{tpu_custom_call.1} parent=11 // pred_fallthru
          _
        // Predicated region
        $region21: #{tpu_custom_call.1} parent=11 // pred_check
          %p271 = pneg %p224
        $region22: #{tpu_custom_call.1} parent=11 // pred_check_branch
          %273 = sbr.rel (%p271) target = $region24
        $region23: #{tpu_custom_call.1} parent=11 // pred_region
          _
        $region24: #{tpu_custom_call.1} parent=11 // pred_fallthru
          _
      $region12: #{tpu_custom_call.1} parent=5 // pred_fallthru
        _
      %p274 = scmp.lt.s32.totalorder %s17, 4
      // Predicated region
      $region25: #{tpu_custom_call.1} parent=5 // pred_check
        %p275 = pneg %p274
      $region26: #{tpu_custom_call.1} parent=5 // pred_check_branch
        %277 = sbr.rel (%p275) target = $region28
      $region27: #{tpu_custom_call.1} parent=5 // pred_region
        // Predicated region
        $region29: #{tpu_custom_call.1} parent=27 // pred_check
          %p278 = pneg %p51
        $region30: #{tpu_custom_call.1} parent=27 // pred_check_branch
          %280 = sbr.rel (%p278) target = $region32
        $region31: #{tpu_custom_call.1} parent=27 // pred_region
          %s281 = sand.u32 %s41, 1
          %s282 = sand.u32 %s41, 1
          %s283 = smul.addr %s282, 64
          %s284 = scalar_lea.vmem [#allocation3], %s283
          %s285 = smul.u32 16, %s24
          %s286 = smul.addr %s285, 2
          %s287 = sadd.s32 %s25, %s286
          %s288 = smul.addr %s287, 4
          %s289 = scalar_lea.vmem %s0, %s288
          // Predicated region
          $region33: #{tpu_custom_call.1} parent=31 // pred_check
            _
          $region34: #{tpu_custom_call.1} parent=31 // pred_check_branch
            %291 = sbr.rel (0) target = $region36
          $region35: #{tpu_custom_call.1} parent=31 // pred_region
            // Predicated region
            $region37: #{tpu_custom_call.1} parent=35 // pred_check
              _
            $region38: #{tpu_custom_call.1} parent=35 // pred_check_branch
              %293 = sbr.rel target = $region40
            $region39: #{tpu_custom_call.1} parent=35 // pred_region
              // Predicated region
              $region52: #{tpu_custom_call.1} parent=39 // pred_check
                _
              $region53: #{tpu_custom_call.1} parent=39 // pred_check_branch
                %339 = sbr.rel (0) target = $region55
              $region54: #{tpu_custom_call.1} parent=39 // pred_region
                loop: start=0, step=1, limit=1
                $region56: #{tpu_custom_call.1} parent=54 // loop_pre_header
                  _
                $region57: #{tpu_custom_call.1} parent=54 // loop_header
                  %s341 = sphi 0, %s345
                  %p342 = scmp.ge.s32.totalorder %s341, 1
                  %s346 = sphi %s289, %s289
                  %s347 = sphi %s284, %s284
                $region58: #{tpu_custom_call.1} parent=54 // loop_header_branch
                  %344 = sbr.rel (%p342) target = $region62
                $region59: #{tpu_custom_call.1} parent=54 // loop_body
                  _
                $region60: #{tpu_custom_call.1} parent=54 // loop_footer
                  %s345 = sadd.s32 1, %s341
                $region61: #{tpu_custom_call.1} parent=54 // loop_footer_branch
                  %340 = sbr.rel target = $region57
                $region62: #{tpu_custom_call.1} parent=54 // loop_exit
                  _
                %s349 = ssub.s32 16, 1
                loop: start=0, step=1, limit=1
                $region63: #{tpu_custom_call.1} parent=54 // loop_pre_header
                  _
                $region64: #{tpu_custom_call.1} parent=54 // loop_header
                  %s351 = sphi 0, %s355
                  %p352 = scmp.ge.s32.totalorder %s351, 1
                  %s356 = sphi %s289, %s289
                  %s357 = sphi %s284, %s284
                $region65: #{tpu_custom_call.1} parent=54 // loop_header_branch
                  %354 = sbr.rel (%p352) target = $region69
                $region66: #{tpu_custom_call.1} parent=54 // loop_body
                  %v358 = vld [vmem:[%s356] sm:%s349]
                  %359 = vst [vmem:[%s357] sm:%s349] %v358
                  %v360 = vld [vmem:[%s356 + $0x8] sm:%s349]
                  %361 = vst [vmem:[%s357 + $0x4] sm:%s349] %v360
                  %v362 = vld [vmem:[%s356 + $0x10] sm:%s349]
                  %363 = vst [vmem:[%s357 + $0x8] sm:%s349] %v362
                  %v364 = vld [vmem:[%s356 + $0x18] sm:%s349]
                  %365 = vst [vmem:[%s357 + $0xc] sm:%s349] %v364
                  %v366 = vld [vmem:[%s356 + $0x20] sm:%s349]
                  %367 = vst [vmem:[%s357 + $0x10] sm:%s349] %v366
                  %v368 = vld [vmem:[%s356 + $0x28] sm:%s349]
                  %369 = vst [vmem:[%s357 + $0x14] sm:%s349] %v368
                  %v370 = vld [vmem:[%s356 + $0x30] sm:%s349]
                  %371 = vst [vmem:[%s357 + $0x18] sm:%s349] %v370
                  %v372 = vld [vmem:[%s356 + $0x38] sm:%s349]
                  %373 = vst [vmem:[%s357 + $0x1c] sm:%s349] %v372
                  %v374 = vld [vmem:[%s356 + $0x40] sm:%s349]
                  %375 = vst [vmem:[%s357 + $0x20] sm:%s349] %v374
                  %v376 = vld [vmem:[%s356 + $0x48] sm:%s349]
                  %377 = vst [vmem:[%s357 + $0x24] sm:%s349] %v376
                  %v378 = vld [vmem:[%s356 + $0x50] sm:%s349]
                  %379 = vst [vmem:[%s357 + $0x28] sm:%s349] %v378
                  %v380 = vld [vmem:[%s356 + $0x58] sm:%s349]
                  %381 = vst [vmem:[%s357 + $0x2c] sm:%s349] %v380
                  %v382 = vld [vmem:[%s356 + $0x60] sm:%s349]
                  %383 = vst [vmem:[%s357 + $0x30] sm:%s349] %v382
                  %v384 = vld [vmem:[%s356 + $0x68] sm:%s349]
                  %385 = vst [vmem:[%s357 + $0x34] sm:%s349] %v384
                  %v386 = vld [vmem:[%s356 + $0x70] sm:%s349]
                  %387 = vst [vmem:[%s357 + $0x38] sm:%s349] %v386
                  %v388 = vld [vmem:[%s356 + $0x78] sm:%s349]
                  %389 = vst [vmem:[%s357 + $0x3c] sm:%s349] %v388
                $region67: #{tpu_custom_call.1} parent=54 // loop_footer
                  %s355 = sadd.s32 1, %s351
                $region68: #{tpu_custom_call.1} parent=54 // loop_footer_branch
                  %350 = sbr.rel target = $region64
                $region69: #{tpu_custom_call.1} parent=54 // loop_exit
                  _
              $region55: #{tpu_custom_call.1} parent=39 // pred_fallthru
                _
            $region40: #{tpu_custom_call.1} parent=35 // pred_fallthru
              _
            // Predicated region
            $region41: #{tpu_custom_call.1} parent=35 // pred_check
              _
            $region42: #{tpu_custom_call.1} parent=35 // pred_check_branch
              %295 = sbr.rel (0) target = $region44
            $region43: #{tpu_custom_call.1} parent=35 // pred_region
              %s297 = ssub.s32 16, 1
              loop: start=0, step=1, limit=1
              $region45: #{tpu_custom_call.1} parent=43 // loop_pre_header
                _
              $region46: #{tpu_custom_call.1} parent=43 // loop_header
                %s299 = sphi 0, %s303
                %p300 = scmp.ge.s32.totalorder %s299, 1
                %s304 = sphi %s289, %s289
                %s305 = sphi %s284, %s284
              $region47: #{tpu_custom_call.1} parent=43 // loop_header_branch
                %302 = sbr.rel (%p300) target = $region51
              $region48: #{tpu_custom_call.1} parent=43 // loop_body
                %v306 = vld [vmem:[%s304] sm:%s297]
                %307 = vst [vmem:[%s305] sm:%s297] %v306
                %v308 = vld [vmem:[%s304 + $0x8] sm:%s297]
                %309 = vst [vmem:[%s305 + $0x4] sm:%s297] %v308
                %v310 = vld [vmem:[%s304 + $0x10] sm:%s297]
                %311 = vst [vmem:[%s305 + $0x8] sm:%s297] %v310
                %v312 = vld [vmem:[%s304 + $0x18] sm:%s297]
                %313 = vst [vmem:[%s305 + $0xc] sm:%s297] %v312
                %v314 = vld [vmem:[%s304 + $0x20] sm:%s297]
                %315 = vst [vmem:[%s305 + $0x10] sm:%s297] %v314
                %v316 = vld [vmem:[%s304 + $0x28] sm:%s297]
                %317 = vst [vmem:[%s305 + $0x14] sm:%s297] %v316
                %v318 = vld [vmem:[%s304 + $0x30] sm:%s297]
                %319 = vst [vmem:[%s305 + $0x18] sm:%s297] %v318
                %v320 = vld [vmem:[%s304 + $0x38] sm:%s297]
                %321 = vst [vmem:[%s305 + $0x1c] sm:%s297] %v320
                %v322 = vld [vmem:[%s304 + $0x40] sm:%s297]
                %323 = vst [vmem:[%s305 + $0x20] sm:%s297] %v322
                %v324 = vld [vmem:[%s304 + $0x48] sm:%s297]
                %325 = vst [vmem:[%s305 + $0x24] sm:%s297] %v324
                %v326 = vld [vmem:[%s304 + $0x50] sm:%s297]
                %327 = vst [vmem:[%s305 + $0x28] sm:%s297] %v326
                %v328 = vld [vmem:[%s304 + $0x58] sm:%s297]
                %329 = vst [vmem:[%s305 + $0x2c] sm:%s297] %v328
                %v330 = vld [vmem:[%s304 + $0x60] sm:%s297]
                %331 = vst [vmem:[%s305 + $0x30] sm:%s297] %v330
                %v332 = vld [vmem:[%s304 + $0x68] sm:%s297]
                %333 = vst [vmem:[%s305 + $0x34] sm:%s297] %v332
                %v334 = vld [vmem:[%s304 + $0x70] sm:%s297]
                %335 = vst [vmem:[%s305 + $0x38] sm:%s297] %v334
                %v336 = vld [vmem:[%s304 + $0x78] sm:%s297]
                %337 = vst [vmem:[%s305 + $0x3c] sm:%s297] %v336
              $region49: #{tpu_custom_call.1} parent=43 // loop_footer
                %s303 = sadd.s32 1, %s299
              $region50: #{tpu_custom_call.1} parent=43 // loop_footer_branch
                %298 = sbr.rel target = $region46
              $region51: #{tpu_custom_call.1} parent=43 // loop_exit
                _
            $region44: #{tpu_custom_call.1} parent=35 // pred_fallthru
              _
          $region36: #{tpu_custom_call.1} parent=31 // pred_fallthru
            _
          %390 = vnop
        $region32: #{tpu_custom_call.1} parent=27 // pred_fallthru
          _
        // Predicated region
        $region70: #{tpu_custom_call.1} parent=27 // pred_check
          %p391 = pneg %p77
        $region71: #{tpu_custom_call.1} parent=27 // pred_check_branch
          %393 = sbr.rel (%p391) target = $region73
        $region72: #{tpu_custom_call.1} parent=27 // pred_region
          %s394 = smul.u32 16, %s25
          %p395 = scmp.lt.s32.totalorder %s394, 31
          %s396 = scalar_select %p395, %s394, 31
          %s397 = smul.addr %s396, 8
          %s398 = scalar_lea.vmem %s1, %s397
          %s399 = smul.u32 16, %s25
        $region73: #{tpu_custom_call.1} parent=27 // pred_fallthru
          _
        // Predicated region
        $region74: #{tpu_custom_call.1} parent=27 // pred_check
          %p400 = pneg %p103
        $region75: #{tpu_custom_call.1} parent=27 // pred_check_branch
          %402 = sbr.rel (%p400) target = $region77
        $region76: #{tpu_custom_call.1} parent=27 // pred_region
          %s403 = smul.u32 16, %s25
          %p404 = scmp.lt.s32.totalorder %s403, 31
          %s405 = scalar_select %p404, %s403, 31
          %s406 = smul.addr %s405, 8
          %s407 = scalar_lea.vmem %s2, %s406
          %s408 = smul.u32 16, %s25
        $region77: #{tpu_custom_call.1} parent=27 // pred_fallthru
          _
        // Predicated region
        $region78: #{tpu_custom_call.1} parent=27 // pred_check
          %p409 = pneg %p129
        $region79: #{tpu_custom_call.1} parent=27 // pred_check_branch
          %411 = sbr.rel (%p409) target = $region81
        $region80: #{tpu_custom_call.1} parent=27 // pred_region
          %s412 = smul.u32 16, %s24
          %p413 = scmp.lt.s32.totalorder %s412, 31
          %s414 = scalar_select %p413, %s412, 31
          %s415 = smul.addr %s414, 8
          %s416 = scalar_lea.vmem %s3, %s415
          %s417 = smul.u32 16, %s24
        $region81: #{tpu_custom_call.1} parent=27 // pred_fallthru
          _
        // Predicated region
        $region82: #{tpu_custom_call.1} parent=27 // pred_check
          %p418 = pneg %p155
        $region83: #{tpu_custom_call.1} parent=27 // pred_check_branch
          %420 = sbr.rel (%p418) target = $region85
        $region84: #{tpu_custom_call.1} parent=27 // pred_region
          %s421 = smul.u32 16, %s24
          %p422 = scmp.lt.s32.totalorder %s421, 31
          %s423 = scalar_select %p422, %s421, 31
          %s424 = smul.addr %s423, 8
          %s425 = scalar_lea.vmem %s4, %s424
          %s426 = smul.u32 16, %s24
        $region85: #{tpu_custom_call.1} parent=27 // pred_fallthru
          _
      $region28: #{tpu_custom_call.1} parent=5 // pred_fallthru
        _
      %p427 = scmp.le.s32.totalorder 1, %s17
      %p428 = scmp.lt.s32.totalorder %s17, 5
      %p429 = pnand %p427, %p428
      %p430 = pneg %p429
      // Predicated region
      $region86: #{tpu_custom_call.1} parent=5 // pred_check
        _
      $region87: #{tpu_custom_call.1} parent=5 // pred_check_branch
        %432 = sbr.rel (%p429) target = $region89
      $region88: #{tpu_custom_call.1} parent=5 // pred_region
        %s433 = ssub.s32 %s17, 1
        %s434 = sand.u32 %s44, 1
        %s435 = sand.u32 %s44, 1
        %s436 = smul.addr %s435, 64
        %s437 = scalar_lea.vmem [#allocation3], %s436
        // Predicated region
        $region90: #{tpu_custom_call.1} parent=88 // pred_check
          %p438 = pneg %p57
        $region91: #{tpu_custom_call.1} parent=88 // pred_check_branch
          %440 = sbr.rel (%p438) target = $region93
        $region92: #{tpu_custom_call.1} parent=88 // pred_region
          _
        $region93: #{tpu_custom_call.1} parent=88 // pred_fallthru
          _
        %s441 = sand.u32 %s44, 1
        %s442 = sand.u32 %s44, 1
        %s443 = smul.addr %s442, 64
        %s444 = scalar_lea.vmem [#allocation3], %s443
        %p445 = pneg %p57
        %p446 = pneg %p54
        %s447 = smul.u32 16, %s27
        %p448 = scmp.lt.s32.totalorder %s447, 31
        %s449 = scalar_select %p448, %s447, 31
        %s450 = smul.addr %s449, 8
        %s451 = scalar_lea.vmem %s1, %s450
        %p452 = pneg %p83
        %p453 = pneg %p80
        %s454 = smul.u32 16, %s27
        %p455 = scmp.lt.s32.totalorder %s454, 31
        %s456 = scalar_select %p455, %s454, 31
        %s457 = smul.addr %s456, 8
        %s458 = scalar_lea.vmem %s2, %s457
        %p459 = pneg %p109
        %p460 = pneg %p106
        %s461 = smul.u32 16, %s26
        %p462 = scmp.lt.s32.totalorder %s461, 31
        %s463 = scalar_select %p462, %s461, 31
        %s464 = smul.addr %s463, 8
        %s465 = scalar_lea.vmem %s3, %s464
        %p466 = pneg %p135
        %p467 = pneg %p132
        %s468 = smul.u32 16, %s26
        %p469 = scmp.lt.s32.totalorder %s468, 31
        %s470 = scalar_select %p469, %s468, 31
        %s471 = smul.addr %s470, 8
        %s472 = scalar_lea.vmem %s4, %s471
        %p473 = pneg %p161
        %p474 = pneg %p158
        %p475 = pneg %p182
        %p476 = pneg %p179
        %p477 = pneg %p203
        %p478 = pneg %p200
        %p479 = pneg %p224
        %p480 = pneg %p221
        %p481 = pneg %p250
        %p482 = pneg %p247
        %s483 = sand.u32 %s237, 1
        %s484 = scalar_lea.sflag [#allocation5], %s483
        %s485 = sand.u32 %s237, 1
        %s486 = smul.addr %s485, 64
        %s487 = scalar_lea.vmem [#allocation4], %s486
        %s488 = smul.u32 16, %s26
        %s489 = smul.u32 16, %s27
        %p490 = scmp.lt.s32.totalorder %s489, 31
        %s491 = scalar_select %p490, %s489, 31
        %s492 = smul.addr %s491, 8
        %s493 = scalar_lea.vmem %s1, %s492
        %s494 = smul.u32 16, %s27
        %s495 = smul.u32 16, %s27
        %p496 = scmp.lt.s32.totalorder %s495, 31
        %s497 = scalar_select %p496, %s495, 31
        %s498 = smul.addr %s497, 8
        %s499 = scalar_lea.vmem %s2, %s498
        %s500 = smul.u32 16, %s27
        %s501 = smul.u32 16, %s26
        %p502 = scmp.lt.s32.totalorder %s501, 31
        %s503 = scalar_select %p502, %s501, 31
        %s504 = smul.addr %s503, 8
        %s505 = scalar_lea.vmem %s3, %s504
        %s506 = smul.u32 16, %s26
        %s507 = smul.u32 16, %s26
        %p508 = scmp.lt.s32.totalorder %s507, 31
        %s509 = scalar_select %p508, %s507, 31
        %s510 = smul.addr %s509, 8
        %s511 = scalar_lea.vmem %s4, %s510
        %s512 = smul.u32 16, %s26
        %s513 = smul.u32 16, %s26
        %p515 = scmp.eq.s32.totalorder %s27, 0
        // Predicated region
        $region94: #{tpu_custom_call.1} parent=88 // pred_check
          %p516 = pneg %p515
        $region95: #{tpu_custom_call.1} parent=88 // pred_check_branch
          %518 = sbr.rel (%p516) target = $region97
        $region96: #{tpu_custom_call.1} parent=88 // pred_region
          %vm519 = vcmask 130048
          %520 = vst.msk [vmem:[#allocation2] sm:$0xff] %vm519, 0.0
          %521 = vst.msk [vmem:[#allocation2 + $0x8] sm:$0xff] %vm519, 0.0
          %522 = vst.msk [vmem:[#allocation2 + $0x10] sm:$0xff] %vm519, 0.0
          %523 = vst.msk [vmem:[#allocation2 + $0x18] sm:$0xff] %vm519, 0.0
          %524 = vst.msk [vmem:[#allocation2 + $0x20] sm:$0xff] %vm519, 0.0
          %525 = vst.msk [vmem:[#allocation2 + $0x28] sm:$0xff] %vm519, 0.0
          %526 = vst.msk [vmem:[#allocation2 + $0x30] sm:$0xff] %vm519, 0.0
          %527 = vst.msk [vmem:[#allocation2 + $0x38] sm:$0xff] %vm519, 0.0
          %528 = vst.msk [vmem:[#allocation2 + $0x40] sm:$0xff] %vm519, 0.0
          %529 = vst.msk [vmem:[#allocation2 + $0x48] sm:$0xff] %vm519, 0.0
          %530 = vst.msk [vmem:[#allocation2 + $0x50] sm:$0xff] %vm519, 0.0
          %531 = vst.msk [vmem:[#allocation2 + $0x58] sm:$0xff] %vm519, 0.0
          %532 = vst.msk [vmem:[#allocation2 + $0x60] sm:$0xff] %vm519, 0.0
          %533 = vst.msk [vmem:[#allocation2 + $0x68] sm:$0xff] %vm519, 0.0
          %534 = vst.msk [vmem:[#allocation2 + $0x70] sm:$0xff] %vm519, 0.0
          %535 = vst.msk [vmem:[#allocation2 + $0x78] sm:$0xff] %vm519, 0.0
        $region97: #{tpu_custom_call.1} parent=88 // pred_fallthru
          _
        %v536 = vld [vmem:[%s499] sm:$0xff]
        %v537 = vld [vmem:[%s499 + $0x8] sm:$0xff]
        %v538 = vld [vmem:[%s499 + $0x10] sm:$0xff]
        %v539 = vld [vmem:[%s499 + $0x18] sm:$0xff]
        %v540 = vld [vmem:[%s499 + $0x20] sm:$0xff]
        %v541 = vld [vmem:[%s499 + $0x28] sm:$0xff]
        %v542 = vld [vmem:[%s499 + $0x30] sm:$0xff]
        %v543 = vld [vmem:[%s499 + $0x38] sm:$0xff]
        %v544 = vld [vmem:[%s499 + $0x40] sm:$0xff]
        %v545 = vld [vmem:[%s499 + $0x48] sm:$0xff]
        %v546 = vld [vmem:[%s499 + $0x50] sm:$0xff]
        %v547 = vld [vmem:[%s499 + $0x58] sm:$0xff]
        %v548 = vld [vmem:[%s499 + $0x60] sm:$0xff]
        %v549 = vld [vmem:[%s499 + $0x68] sm:$0xff]
        %v550 = vld [vmem:[%s499 + $0x70] sm:$0xff]
        %v551 = vld [vmem:[%s499 + $0x78] sm:$0xff]
        %v552 = vld [vmem:[%s493] sm:$0xff]
        %v553 = vld [vmem:[%s493 + $0x8] sm:$0xff]
        %v554 = vld [vmem:[%s493 + $0x10] sm:$0xff]
        %v555 = vld [vmem:[%s493 + $0x18] sm:$0xff]
        %v556 = vld [vmem:[%s493 + $0x20] sm:$0xff]
        %v557 = vld [vmem:[%s493 + $0x28] sm:$0xff]
        %v558 = vld [vmem:[%s493 + $0x30] sm:$0xff]
        %v559 = vld [vmem:[%s493 + $0x38] sm:$0xff]
        %v560 = vld [vmem:[%s493 + $0x40] sm:$0xff]
        %v561 = vld [vmem:[%s493 + $0x48] sm:$0xff]
        %v562 = vld [vmem:[%s493 + $0x50] sm:$0xff]
        %v563 = vld [vmem:[%s493 + $0x58] sm:$0xff]
        %v564 = vld [vmem:[%s493 + $0x60] sm:$0xff]
        %v565 = vld [vmem:[%s493 + $0x68] sm:$0xff]
        %v566 = vld [vmem:[%s493 + $0x70] sm:$0xff]
        %v567 = vld [vmem:[%s493 + $0x78] sm:$0xff]
        %569 = vset.pattern.permute.xlu0 0
        %570 = vperm.xlu0 %569, %v536
        %v571 = vpop.permute.xlu0 %570
        %574 = vset.pattern.permute.xlu0 0
        %575 = vperm.xlu0 %574, %v537
        %v576 = vpop.permute.xlu0 %575
        %579 = vset.pattern.permute.xlu0 0
        %580 = vperm.xlu0 %579, %v538
        %v581 = vpop.permute.xlu0 %580
        %584 = vset.pattern.permute.xlu0 0
        %585 = vperm.xlu0 %584, %v539
        %v586 = vpop.permute.xlu0 %585
        %589 = vset.pattern.permute.xlu0 0
        %590 = vperm.xlu0 %589, %v540
        %v591 = vpop.permute.xlu0 %590
        %594 = vset.pattern.permute.xlu0 0
        %595 = vperm.xlu0 %594, %v541
        %v596 = vpop.permute.xlu0 %595
        %599 = vset.pattern.permute.xlu0 0
        %600 = vperm.xlu0 %599, %v542
        %v601 = vpop.permute.xlu0 %600
        %604 = vset.pattern.permute.xlu0 0
        %605 = vperm.xlu0 %604, %v543
        %v606 = vpop.permute.xlu0 %605
        %609 = vset.pattern.permute.xlu0 0
        %610 = vperm.xlu0 %609, %v544
        %v611 = vpop.permute.xlu0 %610
        %614 = vset.pattern.permute.xlu0 0
        %615 = vperm.xlu0 %614, %v545
        %v616 = vpop.permute.xlu0 %615
        %619 = vset.pattern.permute.xlu0 0
        %620 = vperm.xlu0 %619, %v546
        %v621 = vpop.permute.xlu0 %620
        %624 = vset.pattern.permute.xlu0 0
        %625 = vperm.xlu0 %624, %v547
        %v626 = vpop.permute.xlu0 %625
        %629 = vset.pattern.permute.xlu0 0
        %630 = vperm.xlu0 %629, %v548
        %v631 = vpop.permute.xlu0 %630
        %634 = vset.pattern.permute.xlu0 0
        %635 = vperm.xlu0 %634, %v549
        %v636 = vpop.permute.xlu0 %635
        %639 = vset.pattern.permute.xlu0 0
        %640 = vperm.xlu0 %639, %v550
        %v641 = vpop.permute.xlu0 %640
        %644 = vset.pattern.permute.xlu0 0
        %645 = vperm.xlu0 %644, %v551
        %v646 = vpop.permute.xlu0 %645
        %v648 = vmul.f32 %v571, %v552
        %v649 = vmul.f32 %v576, %v553
        %v650 = vmul.f32 %v581, %v554
        %v651 = vmul.f32 %v586, %v555
        %v652 = vmul.f32 %v591, %v556
        %v653 = vmul.f32 %v596, %v557
        %v654 = vmul.f32 %v601, %v558
        %v655 = vmul.f32 %v606, %v559
        %v656 = vmul.f32 %v611, %v560
        %v657 = vmul.f32 %v616, %v561
        %v658 = vmul.f32 %v621, %v562
        %v659 = vmul.f32 %v626, %v563
        %v660 = vmul.f32 %v631, %v564
        %v661 = vmul.f32 %v636, %v565
        %v662 = vmul.f32 %v641, %v566
        %v663 = vmul.f32 %v646, %v567
        %v664 = vpack.c.bf16 %v649, %v648
        %v665 = vpack.c.bf16 %v651, %v650
        %v666 = vpack.c.bf16 %v653, %v652
        %v667 = vpack.c.bf16 %v655, %v654
        %v668 = vpack.c.bf16 %v657, %v656
        %v669 = vpack.c.bf16 %v659, %v658
        %v670 = vpack.c.bf16 %v661, %v660
        %v671 = vpack.c.bf16 %v663, %v662
        %v672 = vld [vmem:[#allocation2] sm:$0xff]
        %v673 = vld [vmem:[#allocation2 + $0x8] sm:$0xff]
        %v674 = vld [vmem:[#allocation2 + $0x10] sm:$0xff]
        %v675 = vld [vmem:[#allocation2 + $0x18] sm:$0xff]
        %v676 = vld [vmem:[#allocation2 + $0x20] sm:$0xff]
        %v677 = vld [vmem:[#allocation2 + $0x28] sm:$0xff]
        %v678 = vld [vmem:[#allocation2 + $0x30] sm:$0xff]
        %v679 = vld [vmem:[#allocation2 + $0x38] sm:$0xff]
        %v680 = vld [vmem:[#allocation2 + $0x40] sm:$0xff]
        %v681 = vld [vmem:[#allocation2 + $0x48] sm:$0xff]
        %v682 = vld [vmem:[#allocation2 + $0x50] sm:$0xff]
        %v683 = vld [vmem:[#allocation2 + $0x58] sm:$0xff]
        %v684 = vld [vmem:[#allocation2 + $0x60] sm:$0xff]
        %v685 = vld [vmem:[#allocation2 + $0x68] sm:$0xff]
        %v686 = vld [vmem:[#allocation2 + $0x70] sm:$0xff]
        %v687 = vld [vmem:[#allocation2 + $0x78] sm:$0xff]
        %v688 = vld [vmem:[%s437] sm:$0xf]
        %v689 = vld [vmem:[%s437 + $0x4] sm:$0xf]
        %v690 = vld [vmem:[%s437 + $0x8] sm:$0xf]
        %v691 = vld [vmem:[%s437 + $0xc] sm:$0xf]
        %v692 = vld [vmem:[%s437 + $0x10] sm:$0xf]
        %v693 = vld [vmem:[%s437 + $0x14] sm:$0xf]
        %v694 = vld [vmem:[%s437 + $0x18] sm:$0xf]
        %v695 = vld [vmem:[%s437 + $0x1c] sm:$0xf]
        %v696 = vld [vmem:[%s437 + $0x20] sm:$0xf]
        %v697 = vld [vmem:[%s437 + $0x24] sm:$0xf]
        %v698 = vld [vmem:[%s437 + $0x28] sm:$0xf]
        %v699 = vld [vmem:[%s437 + $0x2c] sm:$0xf]
        %v700 = vld [vmem:[%s437 + $0x30] sm:$0xf]
        %v701 = vld [vmem:[%s437 + $0x34] sm:$0xf]
        %v702 = vld [vmem:[%s437 + $0x38] sm:$0xf]
        %v703 = vld [vmem:[%s437 + $0x3c] sm:$0xf]
        %v720 = vunpack.c.l.b16 %v688
        %v721 = vunpack.c.l.b16 %v689
        %v722 = vunpack.c.l.b16 %v690
        %v723 = vunpack.c.l.b16 %v691
        %v724 = vunpack.c.l.b16 %v692
        %v725 = vunpack.c.l.b16 %v693
        %v726 = vunpack.c.l.b16 %v694
        %v727 = vunpack.c.l.b16 %v695
        %v728 = vunpack.c.l.b16 %v696
        %v729 = vunpack.c.l.b16 %v697
        %v730 = vunpack.c.l.b16 %v698
        %v731 = vunpack.c.l.b16 %v699
        %v732 = vunpack.c.l.b16 %v700
        %v733 = vunpack.c.l.b16 %v701
        %v734 = vunpack.c.l.b16 %v702
        %v735 = vunpack.c.l.b16 %v703
        %v736 = vpack.c.b16 %v721, %v720
        %v737 = vpack.c.b16 %v723, %v722
        %v738 = vpack.c.b16 %v725, %v724
        %v739 = vpack.c.b16 %v727, %v726
        %v740 = vpack.c.b16 %v729, %v728
        %v741 = vpack.c.b16 %v731, %v730
        %v742 = vpack.c.b16 %v733, %v732
        %v743 = vpack.c.b16 %v735, %v734
        %752 = vmatpush.bf16.msra.mxu0 %v671
        %753 = vmatpush.bf16.msra.mxu0 %v670
        %754 = vmatpush.bf16.msra.mxu0 %v669
        %755 = vmatpush.bf16.msra.mxu0 %v668
        %756 = vmatpush.bf16.msra.mxu0 %v667
        %757 = vmatpush.bf16.msra.mxu0 %v666
        %758 = vmatpush.bf16.msra.mxu0 %v665
        %759 = vmatpush.bf16.msra.mxu0 %v664
        %760 = vmatmul.bf16.gmra.mxu0 %v736
        %v761 = vpop.f32.mrf.mxu0
        %v762 = vadd.f32 0.0, %v761
        %v763 = vpop.f32.mrf.mxu0
        %v764 = vadd.f32 0.0, %v763
        %765 = vmatmul.bf16.gmra.mxu0 %v737
        %v766 = vpop.f32.mrf.mxu0
        %v767 = vadd.f32 0.0, %v766
        %v768 = vpop.f32.mrf.mxu0
        %v769 = vadd.f32 0.0, %v768
        %770 = vmatmul.bf16.gmra.mxu0 %v738
        %v771 = vpop.f32.mrf.mxu0
        %v772 = vadd.f32 0.0, %v771
        %v773 = vpop.f32.mrf.mxu0
        %v774 = vadd.f32 0.0, %v773
        %775 = vmatmul.bf16.gmra.mxu0 %v739
        %v776 = vpop.f32.mrf.mxu0
        %v777 = vadd.f32 0.0, %v776
        %v778 = vpop.f32.mrf.mxu0
        %v779 = vadd.f32 0.0, %v778
        %780 = vmatmul.bf16.gmra.mxu0 %v740
        %v781 = vpop.f32.mrf.mxu0
        %v782 = vadd.f32 0.0, %v781
        %v783 = vpop.f32.mrf.mxu0
        %v784 = vadd.f32 0.0, %v783
        %785 = vmatmul.bf16.gmra.mxu0 %v741
        %v786 = vpop.f32.mrf.mxu0
        %v787 = vadd.f32 0.0, %v786
        %v788 = vpop.f32.mrf.mxu0
        %v789 = vadd.f32 0.0, %v788
        %790 = vmatmul.bf16.gmra.mxu0 %v742
        %v791 = vpop.f32.mrf.mxu0
        %v792 = vadd.f32 0.0, %v791
        %v793 = vpop.f32.mrf.mxu0
        %v794 = vadd.f32 0.0, %v793
        %795 = vmatmul.bf16.gmra.mxu0 %v743
        %v796 = vpop.f32.mrf.mxu0
        %v797 = vadd.f32 0.0, %v796
        %v798 = vpop.f32.mrf.mxu0
        %v799 = vadd.f32 0.0, %v798
        %800 = vdwg.mxu0
        %v801 = vadd.f32 %v672, %v762
        %v802 = vadd.f32 %v673, %v764
        %v803 = vadd.f32 %v674, %v767
        %v804 = vadd.f32 %v675, %v769
        %v805 = vadd.f32 %v676, %v772
        %v806 = vadd.f32 %v677, %v774
        %v807 = vadd.f32 %v678, %v777
        %v808 = vadd.f32 %v679, %v779
        %v809 = vadd.f32 %v680, %v782
        %v810 = vadd.f32 %v681, %v784
        %v811 = vadd.f32 %v682, %v787
        %v812 = vadd.f32 %v683, %v789
        %v813 = vadd.f32 %v684, %v792
        %v814 = vadd.f32 %v685, %v794
        %v815 = vadd.f32 %v686, %v797
        %v816 = vadd.f32 %v687, %v799
        %vm817 = vcmask 130048
        %818 = vst.msk [vmem:[#allocation2] sm:$0xff] %vm817, %v801
        %819 = vst.msk [vmem:[#allocation2 + $0x8] sm:$0xff] %vm817, %v802
        %820 = vst.msk [vmem:[#allocation2 + $0x10] sm:$0xff] %vm817, %v803
        %821 = vst.msk [vmem:[#allocation2 + $0x18] sm:$0xff] %vm817, %v804
        %822 = vst.msk [vmem:[#allocation2 + $0x20] sm:$0xff] %vm817, %v805
        %823 = vst.msk [vmem:[#allocation2 + $0x28] sm:$0xff] %vm817, %v806
        %824 = vst.msk [vmem:[#allocation2 + $0x30] sm:$0xff] %vm817, %v807
        %825 = vst.msk [vmem:[#allocation2 + $0x38] sm:$0xff] %vm817, %v808
        %826 = vst.msk [vmem:[#allocation2 + $0x40] sm:$0xff] %vm817, %v809
        %827 = vst.msk [vmem:[#allocation2 + $0x48] sm:$0xff] %vm817, %v810
        %828 = vst.msk [vmem:[#allocation2 + $0x50] sm:$0xff] %vm817, %v811
        %829 = vst.msk [vmem:[#allocation2 + $0x58] sm:$0xff] %vm817, %v812
        %830 = vst.msk [vmem:[#allocation2 + $0x60] sm:$0xff] %vm817, %v813
        %831 = vst.msk [vmem:[#allocation2 + $0x68] sm:$0xff] %vm817, %v814
        %832 = vst.msk [vmem:[#allocation2 + $0x70] sm:$0xff] %vm817, %v815
        %833 = vst.msk [vmem:[#allocation2 + $0x78] sm:$0xff] %vm817, %v816
        %p834 = scmp.eq.s32.totalorder %s27, 1
        // Predicated region
        $region98: #{tpu_custom_call.1} parent=88 // pred_check
          %p835 = pneg %p834
        $region99: #{tpu_custom_call.1} parent=88 // pred_check_branch
          %837 = sbr.rel (%p835) target = $region101
        $region100: #{tpu_custom_call.1} parent=88 // pred_region
          %v838 = vld [vmem:[%s505] sm:$0xff]
          %v839 = vld [vmem:[%s505 + $0x8] sm:$0xff]
          %v840 = vld [vmem:[%s505 + $0x10] sm:$0xff]
          %v841 = vld [vmem:[%s505 + $0x18] sm:$0xff]
          %v842 = vld [vmem:[%s505 + $0x20] sm:$0xff]
          %v843 = vld [vmem:[%s505 + $0x28] sm:$0xff]
          %v844 = vld [vmem:[%s505 + $0x30] sm:$0xff]
          %v845 = vld [vmem:[%s505 + $0x38] sm:$0xff]
          %v846 = vld [vmem:[%s505 + $0x40] sm:$0xff]
          %v847 = vld [vmem:[%s505 + $0x48] sm:$0xff]
          %v848 = vld [vmem:[%s505 + $0x50] sm:$0xff]
          %v849 = vld [vmem:[%s505 + $0x58] sm:$0xff]
          %v850 = vld [vmem:[%s505 + $0x60] sm:$0xff]
          %v851 = vld [vmem:[%s505 + $0x68] sm:$0xff]
          %v852 = vld [vmem:[%s505 + $0x70] sm:$0xff]
          %v853 = vld [vmem:[%s505 + $0x78] sm:$0xff]
          %v854 = vld [vmem:[#allocation2] sm:$0xff]
          %v855 = vld [vmem:[#allocation2 + $0x8] sm:$0xff]
          %v856 = vld [vmem:[#allocation2 + $0x10] sm:$0xff]
          %v857 = vld [vmem:[#allocation2 + $0x18] sm:$0xff]
          %v858 = vld [vmem:[#allocation2 + $0x20] sm:$0xff]
          %v859 = vld [vmem:[#allocation2 + $0x28] sm:$0xff]
          %v860 = vld [vmem:[#allocation2 + $0x30] sm:$0xff]
          %v861 = vld [vmem:[#allocation2 + $0x38] sm:$0xff]
          %v862 = vld [vmem:[#allocation2 + $0x40] sm:$0xff]
          %v863 = vld [vmem:[#allocation2 + $0x48] sm:$0xff]
          %v864 = vld [vmem:[#allocation2 + $0x50] sm:$0xff]
          %v865 = vld [vmem:[#allocation2 + $0x58] sm:$0xff]
          %v866 = vld [vmem:[#allocation2 + $0x60] sm:$0xff]
          %v867 = vld [vmem:[#allocation2 + $0x68] sm:$0xff]
          %v868 = vld [vmem:[#allocation2 + $0x70] sm:$0xff]
          %v869 = vld [vmem:[#allocation2 + $0x78] sm:$0xff]
          %871 = vset.pattern.permute.xlu0 0
          %872 = vperm.xlu0 %871, %v838
          %v873 = vpop.permute.xlu0 %872
          %876 = vset.pattern.permute.xlu0 0
          %877 = vperm.xlu0 %876, %v839
          %v878 = vpop.permute.xlu0 %877
          %881 = vset.pattern.permute.xlu0 0
          %882 = vperm.xlu0 %881, %v840
          %v883 = vpop.permute.xlu0 %882
          %886 = vset.pattern.permute.xlu0 0
          %887 = vperm.xlu0 %886, %v841
          %v888 = vpop.permute.xlu0 %887
          %891 = vset.pattern.permute.xlu0 0
          %892 = vperm.xlu0 %891, %v842
          %v893 = vpop.permute.xlu0 %892
          %896 = vset.pattern.permute.xlu0 0
          %897 = vperm.xlu0 %896, %v843
          %v898 = vpop.permute.xlu0 %897
          %901 = vset.pattern.permute.xlu0 0
          %902 = vperm.xlu0 %901, %v844
          %v903 = vpop.permute.xlu0 %902
          %906 = vset.pattern.permute.xlu0 0
          %907 = vperm.xlu0 %906, %v845
          %v908 = vpop.permute.xlu0 %907
          %911 = vset.pattern.permute.xlu0 0
          %912 = vperm.xlu0 %911, %v846
          %v913 = vpop.permute.xlu0 %912
          %916 = vset.pattern.permute.xlu0 0
          %917 = vperm.xlu0 %916, %v847
          %v918 = vpop.permute.xlu0 %917
          %921 = vset.pattern.permute.xlu0 0
          %922 = vperm.xlu0 %921, %v848
          %v923 = vpop.permute.xlu0 %922
          %926 = vset.pattern.permute.xlu0 0
          %927 = vperm.xlu0 %926, %v849
          %v928 = vpop.permute.xlu0 %927
          %931 = vset.pattern.permute.xlu0 0
          %932 = vperm.xlu0 %931, %v850
          %v933 = vpop.permute.xlu0 %932
          %936 = vset.pattern.permute.xlu0 0
          %937 = vperm.xlu0 %936, %v851
          %v938 = vpop.permute.xlu0 %937
          %941 = vset.pattern.permute.xlu0 0
          %942 = vperm.xlu0 %941, %v852
          %v943 = vpop.permute.xlu0 %942
          %946 = vset.pattern.permute.xlu0 0
          %947 = vperm.xlu0 %946, %v853
          %v948 = vpop.permute.xlu0 %947
          %v950 = vmul.f32 %v873, %v854
          %v951 = vmul.f32 %v878, %v855
          %v952 = vmul.f32 %v883, %v856
          %v953 = vmul.f32 %v888, %v857
          %v954 = vmul.f32 %v893, %v858
          %v955 = vmul.f32 %v898, %v859
          %v956 = vmul.f32 %v903, %v860
          %v957 = vmul.f32 %v908, %v861
          %v958 = vmul.f32 %v913, %v862
          %v959 = vmul.f32 %v918, %v863
          %v960 = vmul.f32 %v923, %v864
          %v961 = vmul.f32 %v928, %v865
          %v962 = vmul.f32 %v933, %v866
          %v963 = vmul.f32 %v938, %v867
          %v964 = vmul.f32 %v943, %v868
          %v965 = vmul.f32 %v948, %v869
          %v966 = vpack.c.bf16 %v951, %v950
          %v967 = vpack.c.bf16 %v953, %v952
          %v968 = vpack.c.bf16 %v955, %v954
          %v969 = vpack.c.bf16 %v957, %v956
          %v970 = vpack.c.bf16 %v959, %v958
          %v971 = vpack.c.bf16 %v961, %v960
          %v972 = vpack.c.bf16 %v963, %v962
          %v973 = vpack.c.bf16 %v965, %v964
          %v974 = vld [vmem:[%s5] sm:$0xf]
          %v975 = vld [vmem:[%s5 + $0x4] sm:$0xf]
          %v976 = vld [vmem:[%s6] sm:$0x1]
          %v978 = vperm.slane %v976, 0
          %v982 = vunpack.c.l.b16 %v974
          %v983 = vunpack.c.l.b16 %v975
          %v984 = vpack.c.b16 %v983, %v982
          %v987 = vsel %vm817, %v966, 0
          %v990 = vsel %vm817, %v967, 0
          %v993 = vsel %vm817, %v968, 0
          %v996 = vsel %vm817, %v969, 0
          %v999 = vsel %vm817, %v970, 0
          %v1002 = vsel %vm817, %v971, 0
          %v1005 = vsel %vm817, %v972, 0
          %v1008 = vsel %vm817, %v973, 0
          %1010 = vmatpush.bf16.msra.mxu0 0
          %1011 = vmatpush.bf16.msra.mxu0 0
          %1012 = vmatpush.bf16.msra.mxu0 0
          %1013 = vmatpush.bf16.msra.mxu0 0
          %1014 = vmatpush.bf16.msra.mxu0 0
          %1015 = vmatpush.bf16.msra.mxu0 0
          %1016 = vmatpush.bf16.msra.mxu0 0
          %1017 = vmatpush.bf16.msra.mxu0 %v984
          %1018 = vmatmul.bf16.gmra.mxu0 %v987
          %v1019 = vpop.f32.mrf.mxu0
          %v1020 = vadd.f32 %v978, %v1019
          %v1021 = vpop.f32.mrf.mxu0
          %v1022 = vadd.f32 %v978, %v1021
          %1023 = vmatmul.bf16.gmra.mxu0 %v990
          %v1024 = vpop.f32.mrf.mxu0
          %v1025 = vadd.f32 %v978, %v1024
          %v1026 = vpop.f32.mrf.mxu0
          %v1027 = vadd.f32 %v978, %v1026
          %1028 = vmatmul.bf16.gmra.mxu0 %v993
          %v1029 = vpop.f32.mrf.mxu0
          %v1030 = vadd.f32 %v978, %v1029
          %v1031 = vpop.f32.mrf.mxu0
          %v1032 = vadd.f32 %v978, %v1031
          %1033 = vmatmul.bf16.gmra.mxu0 %v996
          %v1034 = vpop.f32.mrf.mxu0
          %v1035 = vadd.f32 %v978, %v1034
          %v1036 = vpop.f32.mrf.mxu0
          %v1037 = vadd.f32 %v978, %v1036
          %1038 = vmatmul.bf16.gmra.mxu0 %v999
          %v1039 = vpop.f32.mrf.mxu0
          %v1040 = vadd.f32 %v978, %v1039
          %v1041 = vpop.f32.mrf.mxu0
          %v1042 = vadd.f32 %v978, %v1041
          %1043 = vmatmul.bf16.gmra.mxu0 %v1002
          %v1044 = vpop.f32.mrf.mxu0
          %v1045 = vadd.f32 %v978, %v1044
          %v1046 = vpop.f32.mrf.mxu0
          %v1047 = vadd.f32 %v978, %v1046
          %1048 = vmatmul.bf16.gmra.mxu0 %v1005
          %v1049 = vpop.f32.mrf.mxu0
          %v1050 = vadd.f32 %v978, %v1049
          %v1051 = vpop.f32.mrf.mxu0
          %v1052 = vadd.f32 %v978, %v1051
          %1053 = vmatmul.bf16.gmra.mxu0 %v1008
          %v1054 = vpop.f32.mrf.mxu0
          %v1055 = vadd.f32 %v978, %v1054
          %v1056 = vpop.f32.mrf.mxu0
          %v1057 = vadd.f32 %v978, %v1056
          %1058 = vdwg.mxu0
          %v1059 = vmax.f32 %v1020, 0.0
          %v1060 = vmax.f32 %v1022, 0.0
          %v1061 = vmax.f32 %v1025, 0.0
          %v1062 = vmax.f32 %v1027, 0.0
          %v1063 = vmax.f32 %v1030, 0.0
          %v1064 = vmax.f32 %v1032, 0.0
          %v1065 = vmax.f32 %v1035, 0.0
          %v1066 = vmax.f32 %v1037, 0.0
          %v1067 = vmax.f32 %v1040, 0.0
          %v1068 = vmax.f32 %v1042, 0.0
          %v1069 = vmax.f32 %v1045, 0.0
          %v1070 = vmax.f32 %v1047, 0.0
          %v1071 = vmax.f32 %v1050, 0.0
          %v1072 = vmax.f32 %v1052, 0.0
          %v1073 = vmax.f32 %v1055, 0.0
          %v1074 = vmax.f32 %v1057, 0.0
          %v1075 = vpack.c.bf16 %v1060, %v1059
          %v1076 = vpack.c.bf16 %v1062, %v1061
          %v1077 = vpack.c.bf16 %v1064, %v1063
          %v1078 = vpack.c.bf16 %v1066, %v1065
          %v1079 = vpack.c.bf16 %v1068, %v1067
          %v1080 = vpack.c.bf16 %v1070, %v1069
          %v1081 = vpack.c.bf16 %v1072, %v1071
          %v1082 = vpack.c.bf16 %v1074, %v1073
          %v1083 = vld [vmem:[%s7] sm:$0xf]
          %v1084 = vld [vmem:[%s7 + $0x4] sm:$0xf]
          %v1085 = vld [vmem:[%s7 + $0x8] sm:$0xf]
          %v1086 = vld [vmem:[%s7 + $0xc] sm:$0xf]
          %v1091 = vunpack.c.l.b16 %v1083
          %v1092 = vunpack.c.l.b16 %v1084
          %v1093 = vunpack.c.l.b16 %v1085
          %v1094 = vunpack.c.l.b16 %v1086
          %v1095 = vpack.c.b16 %v1092, %v1091
          %v1096 = vpack.c.b16 %v1094, %v1093
          %vm1099 = vcmask 261120
          %v1101 = vsel %vm1099, %v1075, 0
          %v1104 = vsel %vm1099, %v1076, 0
          %v1107 = vsel %vm1099, %v1077, 0
          %v1110 = vsel %vm1099, %v1078, 0
          %v1113 = vsel %vm1099, %v1079, 0
          %v1116 = vsel %vm1099, %v1080, 0
          %v1119 = vsel %vm1099, %v1081, 0
          %v1122 = vsel %vm1099, %v1082, 0
          %1124 = vmatpush.bf16.msra.mxu0 0
          %1125 = vmatpush.bf16.msra.mxu0 0
          %1126 = vmatpush.bf16.msra.mxu0 0
          %1127 = vmatpush.bf16.msra.mxu0 0
          %1128 = vmatpush.bf16.msra.mxu0 0
          %1129 = vmatpush.bf16.msra.mxu0 0
          %1130 = vmatpush.bf16.msra.mxu0 %v1096
          %1131 = vmatpush.bf16.msra.mxu0 %v1095
          %1132 = vmatmul.bf16.gmra.mxu0 %v1101
          %v1133 = vpop.f32.mrf.mxu0
          %v1134 = vadd.f32 0.0, %v1133
          %v1135 = vpop.f32.mrf.mxu0
          %v1136 = vadd.f32 0.0, %v1135
          %1137 = vmatmul.bf16.gmra.mxu0 %v1104
          %v1138 = vpop.f32.mrf.mxu0
          %v1139 = vadd.f32 0.0, %v1138
          %v1140 = vpop.f32.mrf.mxu0
          %v1141 = vadd.f32 0.0, %v1140
          %1142 = vmatmul.bf16.gmra.mxu0 %v1107
          %v1143 = vpop.f32.mrf.mxu0
          %v1144 = vadd.f32 0.0, %v1143
          %v1145 = vpop.f32.mrf.mxu0
          %v1146 = vadd.f32 0.0, %v1145
          %1147 = vmatmul.bf16.gmra.mxu0 %v1110
          %v1148 = vpop.f32.mrf.mxu0
          %v1149 = vadd.f32 0.0, %v1148
          %v1150 = vpop.f32.mrf.mxu0
          %v1151 = vadd.f32 0.0, %v1150
          %1152 = vmatmul.bf16.gmra.mxu0 %v1113
          %v1153 = vpop.f32.mrf.mxu0
          %v1154 = vadd.f32 0.0, %v1153
          %v1155 = vpop.f32.mrf.mxu0
          %v1156 = vadd.f32 0.0, %v1155
          %1157 = vmatmul.bf16.gmra.mxu0 %v1116
          %v1158 = vpop.f32.mrf.mxu0
          %v1159 = vadd.f32 0.0, %v1158
          %v1160 = vpop.f32.mrf.mxu0
          %v1161 = vadd.f32 0.0, %v1160
          %1162 = vmatmul.bf16.gmra.mxu0 %v1119
          %v1163 = vpop.f32.mrf.mxu0
          %v1164 = vadd.f32 0.0, %v1163
          %v1165 = vpop.f32.mrf.mxu0
          %v1166 = vadd.f32 0.0, %v1165
          %1167 = vmatmul.bf16.gmra.mxu0 %v1122
          %v1168 = vpop.f32.mrf.mxu0
          %v1169 = vadd.f32 0.0, %v1168
          %v1170 = vpop.f32.mrf.mxu0
          %v1171 = vadd.f32 0.0, %v1170
          %1172 = vdwg.mxu0
          %v1173 = vld [vmem:[%s511] sm:$0xff]
          %v1174 = vld [vmem:[%s511 + $0x8] sm:$0xff]
          %v1175 = vld [vmem:[%s511 + $0x10] sm:$0xff]
          %v1176 = vld [vmem:[%s511 + $0x18] sm:$0xff]
          %v1177 = vld [vmem:[%s511 + $0x20] sm:$0xff]
          %v1178 = vld [vmem:[%s511 + $0x28] sm:$0xff]
          %v1179 = vld [vmem:[%s511 + $0x30] sm:$0xff]
          %v1180 = vld [vmem:[%s511 + $0x38] sm:$0xff]
          %v1181 = vld [vmem:[%s511 + $0x40] sm:$0xff]
          %v1182 = vld [vmem:[%s511 + $0x48] sm:$0xff]
          %v1183 = vld [vmem:[%s511 + $0x50] sm:$0xff]
          %v1184 = vld [vmem:[%s511 + $0x58] sm:$0xff]
          %v1185 = vld [vmem:[%s511 + $0x60] sm:$0xff]
          %v1186 = vld [vmem:[%s511 + $0x68] sm:$0xff]
          %v1187 = vld [vmem:[%s511 + $0x70] sm:$0xff]
          %v1188 = vld [vmem:[%s511 + $0x78] sm:$0xff]
          %1190 = vset.pattern.permute.xlu0 0
          %1191 = vperm.xlu0 %1190, %v1173
          %v1192 = vpop.permute.xlu0 %1191
          %1195 = vset.pattern.permute.xlu0 0
          %1196 = vperm.xlu0 %1195, %v1174
          %v1197 = vpop.permute.xlu0 %1196
          %1200 = vset.pattern.permute.xlu0 0
          %1201 = vperm.xlu0 %1200, %v1175
          %v1202 = vpop.permute.xlu0 %1201
          %1205 = vset.pattern.permute.xlu0 0
          %1206 = vperm.xlu0 %1205, %v1176
          %v1207 = vpop.permute.xlu0 %1206
          %1210 = vset.pattern.permute.xlu0 0
          %1211 = vperm.xlu0 %1210, %v1177
          %v1212 = vpop.permute.xlu0 %1211
          %1215 = vset.pattern.permute.xlu0 0
          %1216 = vperm.xlu0 %1215, %v1178
          %v1217 = vpop.permute.xlu0 %1216
          %1220 = vset.pattern.permute.xlu0 0
          %1221 = vperm.xlu0 %1220, %v1179
          %v1222 = vpop.permute.xlu0 %1221
          %1225 = vset.pattern.permute.xlu0 0
          %1226 = vperm.xlu0 %1225, %v1180
          %v1227 = vpop.permute.xlu0 %1226
          %1230 = vset.pattern.permute.xlu0 0
          %1231 = vperm.xlu0 %1230, %v1181
          %v1232 = vpop.permute.xlu0 %1231
          %1235 = vset.pattern.permute.xlu0 0
          %1236 = vperm.xlu0 %1235, %v1182
          %v1237 = vpop.permute.xlu0 %1236
          %1240 = vset.pattern.permute.xlu0 0
          %1241 = vperm.xlu0 %1240, %v1183
          %v1242 = vpop.permute.xlu0 %1241
          %1245 = vset.pattern.permute.xlu0 0
          %1246 = vperm.xlu0 %1245, %v1184
          %v1247 = vpop.permute.xlu0 %1246
          %1250 = vset.pattern.permute.xlu0 0
          %1251 = vperm.xlu0 %1250, %v1185
          %v1252 = vpop.permute.xlu0 %1251
          %1255 = vset.pattern.permute.xlu0 0
          %1256 = vperm.xlu0 %1255, %v1186
          %v1257 = vpop.permute.xlu0 %1256
          %1260 = vset.pattern.permute.xlu0 0
          %1261 = vperm.xlu0 %1260, %v1187
          %v1262 = vpop.permute.xlu0 %1261
          %1265 = vset.pattern.permute.xlu0 0
          %1266 = vperm.xlu0 %1265, %v1188
          %v1267 = vpop.permute.xlu0 %1266
          %v1269 = vmul.f32 %v1192, %v1134
          %v1270 = vmul.f32 %v1197, %v1136
          %v1271 = vmul.f32 %v1202, %v1139
          %v1272 = vmul.f32 %v1207, %v1141
          %v1273 = vmul.f32 %v1212, %v1144
          %v1274 = vmul.f32 %v1217, %v1146
          %v1275 = vmul.f32 %v1222, %v1149
          %v1276 = vmul.f32 %v1227, %v1151
          %v1277 = vmul.f32 %v1232, %v1154
          %v1278 = vmul.f32 %v1237, %v1156
          %v1279 = vmul.f32 %v1242, %v1159
          %v1280 = vmul.f32 %v1247, %v1161
          %v1281 = vmul.f32 %v1252, %v1164
          %v1282 = vmul.f32 %v1257, %v1166
          %v1283 = vmul.f32 %v1262, %v1169
          %v1284 = vmul.f32 %v1267, %v1171
          %v1285 = vpack.c.bf16 %v1269, %v1269
          %v1286 = vpack.c.bf16 %v1270, %v1270
          %v1287 = vpack.c.bf16 %v1271, %v1271
          %v1288 = vpack.c.bf16 %v1272, %v1272
          %v1289 = vpack.c.bf16 %v1273, %v1273
          %v1290 = vpack.c.bf16 %v1274, %v1274
          %v1291 = vpack.c.bf16 %v1275, %v1275
          %v1292 = vpack.c.bf16 %v1276, %v1276
          %v1293 = vpack.c.bf16 %v1277, %v1277
          %v1294 = vpack.c.bf16 %v1278, %v1278
          %v1295 = vpack.c.bf16 %v1279, %v1279
          %v1296 = vpack.c.bf16 %v1280, %v1280
          %v1297 = vpack.c.bf16 %v1281, %v1281
          %v1298 = vpack.c.bf16 %v1282, %v1282
          %v1299 = vpack.c.bf16 %v1283, %v1283
          %v1300 = vpack.c.bf16 %v1284, %v1284
          %1301 = vst [vmem:[%s487] sm:$0xf] %v1285
          %1302 = vst [vmem:[%s487 + $0x4] sm:$0xf] %v1286
          %1303 = vst [vmem:[%s487 + $0x8] sm:$0xf] %v1287
          %1304 = vst [vmem:[%s487 + $0xc] sm:$0xf] %v1288
          %1305 = vst [vmem:[%s487 + $0x10] sm:$0xf] %v1289
          %1306 = vst [vmem:[%s487 + $0x14] sm:$0xf] %v1290
          %1307 = vst [vmem:[%s487 + $0x18] sm:$0xf] %v1291
          %1308 = vst [vmem:[%s487 + $0x1c] sm:$0xf] %v1292
          %1309 = vst [vmem:[%s487 + $0x20] sm:$0xf] %v1293
          %1310 = vst [vmem:[%s487 + $0x24] sm:$0xf] %v1294
          %1311 = vst [vmem:[%s487 + $0x28] sm:$0xf] %v1295
          %1312 = vst [vmem:[%s487 + $0x2c] sm:$0xf] %v1296
          %1313 = vst [vmem:[%s487 + $0x30] sm:$0xf] %v1297
          %1314 = vst [vmem:[%s487 + $0x34] sm:$0xf] %v1298
          %1315 = vst [vmem:[%s487 + $0x38] sm:$0xf] %v1299
          %1316 = vst [vmem:[%s487 + $0x3c] sm:$0xf] %v1300
        $region101: #{tpu_custom_call.1} parent=88 // pred_fallthru
          _
        %s1317 = sand.u32 %s237, 1
        %s1318 = scalar_lea.sflag [#allocation5], %s1317
        %s1319 = sand.u32 %s237, 1
        %s1320 = smul.addr %s1319, 64
        %s1321 = scalar_lea.vmem [#allocation4], %s1320
        // Predicated region
        $region102: #{tpu_custom_call.1} parent=88 // pred_check
          %p1322 = pneg %p247
        $region103: #{tpu_custom_call.1} parent=88 // pred_check_branch
          %1324 = sbr.rel (%p1322) target = $region105
        $region104: #{tpu_custom_call.1} parent=88 // pred_region
          %s1325 = smul.u32 16, %s26
          %1327 = vsyncadd %s1318, 0
          %s1328 = smul.addr %s1325, 4
          %s1329 = scalar_lea.hbm %s8, %s1328
          %s1330 = sshll.u32 %s1321, 4
          %s1331 = int_to_ptr.vmem [resolvable:$true] %s1330
          %s1332 = sshll.u32 %s1329, 4
          %s1333 = int_to_ptr.hbm [resolvable:$true] %s1332
          %1338 = dma.vmem_to_hbm [thread:$0]  %s1331, 1024, %s1333, %s1318, 64, 64, 4
        $region105: #{tpu_custom_call.1} parent=88 // pred_fallthru
          _
      $region89: #{tpu_custom_call.1} parent=5 // pred_fallthru
        _
      %p1339 = scmp.le.s32.totalorder 2, %s17
      // Predicated region
      $region106: #{tpu_custom_call.1} parent=5 // pred_check
        %p1340 = pneg %p1339
      $region107: #{tpu_custom_call.1} parent=5 // pred_check_branch
        %1342 = sbr.rel (%p1340) target = $region109
      $region108: #{tpu_custom_call.1} parent=5 // pred_region
        %s1343 = ssub.s32 %s17, 2
        // Predicated region
        $region110: #{tpu_custom_call.1} parent=108 // pred_check
          %p1344 = pneg %p253
        $region111: #{tpu_custom_call.1} parent=108 // pred_check_branch
          %1346 = sbr.rel (%p1344) target = $region113
        $region112: #{tpu_custom_call.1} parent=108 // pred_region
          %s1347 = sand.u32 %s238, 1
          %s1348 = scalar_lea.sflag [#allocation5], %s1347
          %s1349 = sand.u32 %s238, 1
          %s1350 = smul.addr %s1349, 64
          %s1351 = scalar_lea.vmem [#allocation4], %s1350
          %1353 = dma.done %s1348, 1024
        $region113: #{tpu_custom_call.1} parent=108 // pred_fallthru
          _
      $region109: #{tpu_custom_call.1} parent=5 // pred_fallthru
        _
    $region6: #{tpu_custom_call.1} parent=1 // loop_footer
      %s21 = sadd.s32 1, %s17
    $region7: #{tpu_custom_call.1} parent=1 // loop_footer_branch
      %16 = sbr.rel target = $region3
    $region8: #{tpu_custom_call.1} parent=1 // loop_exit
      _
    %1354 = vsyncpa [#allocation5], 1
    %s1355 = scalar_lea.sflag [#allocation5], 1
    %1356 = vsyncpa %s1355, 1

</llo_original>
